<compile_context>
chip_gen: v7x
topology: tpu7x:2x2x1
jax: 0.10.0
libtpu: 0.0.40
codegen_flags: <defaults>
</compile_context>

<pallas_src>
import functools
import math

import jax
import jax.numpy as jnp
import numpy as np
from jax.experimental import pallas as pl
from jax.experimental.pallas import tpu as pltpu

# ---- model dims (small, consistent with the module: hidden % heads == 0) ----
B = 2           # batch
S = 8           # sequence length (tokens)
H = 32          # config.hidden_size
NUM_HEADS = 4   # config.transformer['num_heads']
HEAD_DIM = H // NUM_HEADS
BS = B * S      # flattened token count


def attention_kernel(x_ref, wqkv_ref, bqkv_ref, hmask_ref, wo_ref, bo_ref,
                     out_ref, probs_ref=None, *, emit_probs=True):
    x = x_ref[...]                                                   # (B*S, H) f32

    # Fused QKV projection: one MXU push.  The softmax scale is already folded
    # into the Q columns of wqkv/bqkv (host side), so no `* scale` below.
    qkv = jnp.dot(x, wqkv_ref[...],
                  preferred_element_type=jnp.float32) + bqkv_ref[...]  # (B*S, 3H)
    q = qkv[:, 0:H]
    k = qkv[:, H:2 * H]
    v = qkv[:, 2 * H:3 * H]

    hmask = hmask_ref[...]                                           # (NUM_HEADS, H) 0/1

    ctx_blocks = [jnp.zeros((S, H), jnp.float32) for _ in range(B)]
    prob_blocks = [[] for _ in range(B)]

    for h in range(NUM_HEADS):
        # Zero all non-head columns of k/v; q stays unmasked (cross-head terms of
        # the contraction are exactly 0 against the zeroed k columns).
        m = hmask[h:h + 1, :]                                        # (1, H)
        k_h = k * m
        v_h = v * m
        for b in range(B):
            r0, r1 = b * S, (b + 1) * S                 # static, sublane-aligned slice
            s = jax.lax.dot_general(q[r0:r1, :], k_h[r0:r1, :],
                                    (((1,), (1,)), ((), ())),
                                    preferred_element_type=jnp.float32)   # (S, S)
            s = s - jnp.max(s, axis=-1, keepdims=True)
            p = jnp.exp(s)
            # reciprocal-multiply (exact) on the narrow (S,1) column + one tile
            # multiply, instead of a full-tile divide.
            p = p * (1.0 / jnp.sum(p, axis=-1, keepdims=True))
            if emit_probs:
                prob_blocks[b].append(p)
            # head-h output lands in its own column block of ctx; additive over heads.
            ctx_blocks[b] = ctx_blocks[b] + jnp.dot(
                p, v_h[r0:r1, :], preferred_element_type=jnp.float32)

    ctx = jnp.concatenate(ctx_blocks, axis=0)                        # (B*S, H)

    if emit_probs:
        # Single store of all (batch, head) probability blocks:
        # probs2d[b*S + i, h*S + j] = softmax(q_h k_h^T / sqrt(hd))[b, i, j]
        probs_ref[...] = jnp.concatenate(
            [jnp.concatenate(pb, axis=-1) for pb in prob_blocks],
            axis=0).astype(probs_ref.dtype)

    attn_out = jnp.dot(ctx, wo_ref[...],
                       preferred_element_type=jnp.float32) + bo_ref[...]
    out_ref[...] = attn_out.astype(out_ref.dtype)


def prepare_params(params):
    """One-time host-side parameter prep (hoisted out of the forward pass)."""
    wq, bq, wk, bk, wv, bv, wo, bo = params
    scale = 1.0 / math.sqrt(HEAD_DIM)
    # Fused QKV weight/bias with the softmax scale folded into the Q columns.
    w_qkv = jnp.concatenate([wq * scale, wk, wv], axis=1)            # (H, 3H)
    b_qkv = jnp.concatenate([bq * scale, bk, bv], axis=1)            # (1, 3H)
    # Per-head 0/1 column masks (replace in-kernel iota/compare/select chains).
    hm = np.zeros((NUM_HEADS, H), np.float32)
    for h in range(NUM_HEADS):
        hm[h, h * HEAD_DIM:(h + 1) * HEAD_DIM] = 1.0
    return w_qkv, b_qkv, jnp.asarray(hm), wo, bo


def attention_forward(x, prepped, return_probs=True):
    """x: (B, S, H).  Returns (attention_output (B,S,H), weights_to_vis or None)."""
    w_qkv, b_qkv, head_mask, wo, bo = prepped
    x2d = x.reshape(BS, H)

    in_specs = [
        pl.BlockSpec((BS, H), lambda i: (0, 0)),                 # x (flattened tokens)
        pl.BlockSpec((H, 3 * H), lambda i: (0, 0)),              # fused Wqkv (scale folded)
        pl.BlockSpec((1, 3 * H), lambda i: (0, 0)),              # fused bqkv
        pl.BlockSpec((NUM_HEADS, H), lambda i: (0, 0)),          # per-head column masks
        pl.BlockSpec((H, H), lambda i: (0, 0)),                  # Wo
        pl.BlockSpec((1, H), lambda i: (0, 0)),                  # bo
    ]

    kernel = functools.partial(attention_kernel, emit_probs=return_probs)
    if return_probs:
        out_specs = (
            pl.BlockSpec((BS, H), lambda i: (0, 0)),
            pl.BlockSpec((BS, NUM_HEADS * S), lambda i: (0, 0)),
        )
        out_shape = (
            jax.ShapeDtypeStruct((BS, H), jnp.float32),
            jax.ShapeDtypeStruct((BS, NUM_HEADS * S), jnp.float32),
        )
    else:
        out_specs = pl.BlockSpec((BS, H), lambda i: (0, 0))
        out_shape = jax.ShapeDtypeStruct((BS, H), jnp.float32)

    result = pl.pallas_call(
        kernel,
        grid=(1,),                     # single invocation: all B*S tokens together
        in_specs=in_specs,
        out_specs=out_specs,
        out_shape=out_shape,
        compiler_params=pltpu.CompilerParams(dimension_semantics=("arbitrary",)),
    )(x2d, w_qkv, b_qkv, head_mask, wo, bo)

    if return_probs:
        out2d, probs2d = result
        probs = probs2d.reshape(B, S, NUM_HEADS, S).transpose(0, 2, 1, 3)
        return out2d.reshape(B, S, H), probs
    return result.reshape(B, S, H), None


# ---------------- pure-JAX reference (for verification) ----------------
def ref_attention(x, params):
    wq, bq, wk, bk, wv, bv, wo, bo = params
    q = x @ wq + bq
    k = x @ wk + bk
    v = x @ wv + bv

    def split(t):
        return t.reshape(B, S, NUM_HEADS, HEAD_DIM).transpose(0, 2, 1, 3)

    qh, kh, vh = split(q), split(k), split(v)
    scores = jnp.einsum("bhqd,bhkd->bhqk", qh, kh) / math.sqrt(HEAD_DIM)
    probs = jax.nn.softmax(scores, axis=-1)                 # weights_to_vis
    ctx = jnp.einsum("bhqk,bhkd->bhqd", probs, vh)
    ctx = ctx.transpose(0, 2, 1, 3).reshape(B, S, H)
    attn_out = ctx @ wo + bo                                # proj_dropout == identity (eval)
    return attn_out, probs


if __name__ == "__main__":
    key = jax.random.PRNGKey(0)
    keys = jax.random.split(key, 10)

    x = jax.random.normal(keys[0], (B, S, H), jnp.float32)

    def w(k_, shape, scale=0.05):
        return (scale * jax.random.normal(k_, shape)).astype(jnp.float32)

    params = (
        w(keys[1], (H, H)), w(keys[2], (1, H), 0.01),   # Wq, bq
        w(keys[3], (H, H)), w(keys[4], (1, H), 0.01),   # Wk, bk
        w(keys[5], (H, H)), w(keys[6], (1, H), 0.01),   # Wv, bv
        w(keys[7], (H, H)), w(keys[8], (1, H), 0.01),   # Wo, bo
    )

    prepped = prepare_params(params)                    # one-time host-side prep

    out, probs = attention_forward(x, prepped, return_probs=True)
    jax.block_until_ready((out, probs))

    ref_out, ref_probs = ref_attention(x, params)
    np.testing.assert_allclose(np.asarray(out), np.asarray(ref_out),
                               rtol=2e-5, atol=2e-5)
    np.testing.assert_allclose(np.asarray(probs), np.asarray(ref_probs),
                               rtol=2e-5, atol=2e-5)

    # visualization-off path: skips prob assembly, the probs store and the 2nd DMA
    out_novis, _ = attention_forward(x, prepped, return_probs=False)
    jax.block_until_ready(out_novis)
    np.testing.assert_allclose(np.asarray(out_novis), np.asarray(ref_out),
                               rtol=2e-5, atol=2e-5)

    print("KERNEL_OK")
</pallas_src>

<mosaic_0001>
module attributes {stable_mosaic.version = 11 : i64} {
  func.func @attention_kernel(%arg0: i32, %arg1: memref<16x32xf32, #tpu.memory_space<vmem>>, %arg2: memref<32x96xf32, #tpu.memory_space<vmem>>, %arg3: memref<1x96xf32, #tpu.memory_space<vmem>>, %arg4: memref<4x32xf32, #tpu.memory_space<vmem>>, %arg5: memref<32x32xf32, #tpu.memory_space<vmem>>, %arg6: memref<1x32xf32, #tpu.memory_space<vmem>>, %arg7: memref<16x32xf32, #tpu.memory_space<vmem>>, %arg8: memref<16x32xf32, #tpu.memory_space<vmem>>) attributes {dimension_semantics = [#tpu.dimension_semantics<arbitrary>], iteration_bounds = array<i64: 1>, scalar_prefetch = 0 : i64, scratch_operands = 0 : i64, tpu.core_type = #tpu.core_type<tc>, window_params = [{pipeline_mode = #tpu.pipeline_mode<synchronous>, transform_indices = @transform_0, window_bounds = array<i64: 16, 32>}, {pipeline_mode = #tpu.pipeline_mode<synchronous>, transform_indices = @transform_1, window_bounds = array<i64: 32, 96>}, {pipeline_mode = #tpu.pipeline_mode<synchronous>, transform_indices = @transform_2, window_bounds = array<i64: 1, 96>}, {pipeline_mode = #tpu.pipeline_mode<synchronous>, transform_indices = @transform_3, window_bounds = array<i64: 4, 32>}, {pipeline_mode = #tpu.pipeline_mode<synchronous>, transform_indices = @transform_4, window_bounds = array<i64: 32, 32>}, {pipeline_mode = #tpu.pipeline_mode<synchronous>, transform_indices = @transform_5, window_bounds = array<i64: 1, 32>}, {pipeline_mode = #tpu.pipeline_mode<synchronous>, transform_indices = @transform_6, window_bounds = array<i64: 16, 32>}, {pipeline_mode = #tpu.pipeline_mode<synchronous>, transform_indices = @transform_7, window_bounds = array<i64: 16, 32>}]} {
    %c0 = arith.constant 0 : index
    %c0_0 = arith.constant 0 : index
    %0 = vector.load %arg1[%c0, %c0_0] : memref<16x32xf32, #tpu.memory_space<vmem>>, vector<16x32xf32>
    %c0_1 = arith.constant 0 : index
    %c0_2 = arith.constant 0 : index
    %1 = vector.load %arg2[%c0_1, %c0_2] : memref<32x96xf32, #tpu.memory_space<vmem>>, vector<32x96xf32>
    %cst = arith.constant dense<0.000000e+00> : vector<16x96xf32>
    %2 = tpu.matmul %0, %1, %cst {dimension_numbers = #tpu.dot_dimension_numbers<[1], [0], [0], [1], [0, 0, 1, 1], [], []>} : vector<16x32xf32>, vector<32x96xf32>, vector<16x96xf32> -> vector<16x96xf32>
    %c0_3 = arith.constant 0 : index
    %c0_4 = arith.constant 0 : index
    %3 = vector.load %arg3[%c0_3, %c0_4] : memref<1x96xf32, #tpu.memory_space<vmem>>, vector<1x96xf32>
    %4 = vector.broadcast %3 : vector<1x96xf32> to vector<16x96xf32>
    %5 = arith.addf %2, %4 : vector<16x96xf32>
    %6 = vector.extract_strided_slice %5 {offsets = [0, 0], sizes = [16, 32], strides = [1, 1]} : vector<16x96xf32> to vector<16x32xf32>
    %7 = vector.extract_strided_slice %5 {offsets = [0, 32], sizes = [16, 32], strides = [1, 1]} : vector<16x96xf32> to vector<16x32xf32>
    %8 = vector.extract_strided_slice %5 {offsets = [0, 64], sizes = [16, 32], strides = [1, 1]} : vector<16x96xf32> to vector<16x32xf32>
    %c0_5 = arith.constant 0 : index
    %c0_6 = arith.constant 0 : index
    %9 = vector.load %arg4[%c0_5, %c0_6] : memref<4x32xf32, #tpu.memory_space<vmem>>, vector<4x32xf32>
    %cst_7 = arith.constant 0.000000e+00 : f32
    %10 = vector.broadcast %cst_7 : f32 to vector<8x32xf32>
    %cst_8 = arith.constant 0.000000e+00 : f32
    %11 = vector.broadcast %cst_8 : f32 to vector<8x32xf32>
    %12 = vector.extract_strided_slice %9 {offsets = [0, 0], sizes = [1, 32], strides = [1, 1]} : vector<4x32xf32> to vector<1x32xf32>
    %13 = vector.broadcast %12 : vector<1x32xf32> to vector<16x32xf32>
    %14 = arith.mulf %7, %13 : vector<16x32xf32>
    %15 = vector.broadcast %12 : vector<1x32xf32> to vector<16x32xf32>
    %16 = arith.mulf %8, %15 : vector<16x32xf32>
    %17 = vector.extract_strided_slice %6 {offsets = [0, 0], sizes = [8, 32], strides = [1, 1]} : vector<16x32xf32> to vector<8x32xf32>
    %18 = vector.extract_strided_slice %14 {offsets = [0, 0], sizes = [8, 32], strides = [1, 1]} : vector<16x32xf32> to vector<8x32xf32>
    %cst_9 = arith.constant dense<0.000000e+00> : vector<8x8xf32>
    %19 = tpu.matmul %17, %18, %cst_9 {dimension_numbers = #tpu.dot_dimension_numbers<[1], [1], [0], [0], [0, 0, 1, 0], [], []>} : vector<8x32xf32>, vector<8x32xf32>, vector<8x8xf32> -> vector<8x8xf32>
    %cst_10 = arith.constant dense<0xFF800000> : vector<8xf32>
    %20 = vector.multi_reduction <maximumf>, %19, %cst_10 [1] : vector<8x8xf32> to vector<8xf32>
    %21 = vector.shape_cast %20 : vector<8xf32> to vector<8x1xf32>
    %22 = vector.broadcast %21 : vector<8x1xf32> to vector<8x8xf32>
    %23 = arith.subf %19, %22 : vector<8x8xf32>
    %24 = math.exp %23 : vector<8x8xf32>
    %cst_11 = arith.constant dense<0.000000e+00> : vector<8xf32>
    %25 = vector.multi_reduction <add>, %24, %cst_11 [1] : vector<8x8xf32> to vector<8xf32>
    %26 = vector.shape_cast %25 : vector<8xf32> to vector<8x1xf32>
    %cst_12 = arith.constant 1.000000e+00 : f32
    %27 = vector.broadcast %cst_12 : f32 to vector<8x1xf32>
    %28 = arith.divf %27, %26 : vector<8x1xf32>
    %29 = vector.broadcast %28 : vector<8x1xf32> to vector<8x8xf32>
    %30 = arith.mulf %24, %29 : vector<8x8xf32>
    %31 = vector.extract_strided_slice %16 {offsets = [0, 0], sizes = [8, 32], strides = [1, 1]} : vector<16x32xf32> to vector<8x32xf32>
    %cst_13 = arith.constant dense<0.000000e+00> : vector<8x32xf32>
    %32 = tpu.matmul %30, %31, %cst_13 {dimension_numbers = #tpu.dot_dimension_numbers<[1], [0], [0], [1], [0, 0, 1, 1], [], []>} : vector<8x8xf32>, vector<8x32xf32>, vector<8x32xf32> -> vector<8x32xf32>
    %33 = arith.addf %10, %32 : vector<8x32xf32>
    %34 = vector.extract_strided_slice %6 {offsets = [8, 0], sizes = [8, 32], strides = [1, 1]} : vector<16x32xf32> to vector<8x32xf32>
    %35 = vector.extract_strided_slice %14 {offsets = [8, 0], sizes = [8, 32], strides = [1, 1]} : vector<16x32xf32> to vector<8x32xf32>
    %cst_14 = arith.constant dense<0.000000e+00> : vector<8x8xf32>
    %36 = tpu.matmul %34, %35, %cst_14 {dimension_numbers = #tpu.dot_dimension_numbers<[1], [1], [0], [0], [0, 0, 1, 0], [], []>} : vector<8x32xf32>, vector<8x32xf32>, vector<8x8xf32> -> vector<8x8xf32>
    %cst_15 = arith.constant dense<0xFF800000> : vector<8xf32>
    %37 = vector.multi_reduction <maximumf>, %36, %cst_15 [1] : vector<8x8xf32> to vector<8xf32>
    %38 = vector.shape_cast %37 : vector<8xf32> to vector<8x1xf32>
    %39 = vector.broadcast %38 : vector<8x1xf32> to vector<8x8xf32>
    %40 = arith.subf %36, %39 : vector<8x8xf32>
    %41 = math.exp %40 : vector<8x8xf32>
    %cst_16 = arith.constant dense<0.000000e+00> : vector<8xf32>
    %42 = vector.multi_reduction <add>, %41, %cst_16 [1] : vector<8x8xf32> to vector<8xf32>
    %43 = vector.shape_cast %42 : vector<8xf32> to vector<8x1xf32>
    %cst_17 = arith.constant 1.000000e+00 : f32
    %44 = vector.broadcast %cst_17 : f32 to vector<8x1xf32>
    %45 = arith.divf %44, %43 : vector<8x1xf32>
    %46 = vector.broadcast %45 : vector<8x1xf32> to vector<8x8xf32>
    %47 = arith.mulf %41, %46 : vector<8x8xf32>
    %48 = vector.extract_strided_slice %16 {offsets = [8, 0], sizes = [8, 32], strides = [1, 1]} : vector<16x32xf32> to vector<8x32xf32>
    %cst_18 = arith.constant dense<0.000000e+00> : vector<8x32xf32>
    %49 = tpu.matmul %47, %48, %cst_18 {dimension_numbers = #tpu.dot_dimension_numbers<[1], [0], [0], [1], [0, 0, 1, 1], [], []>} : vector<8x8xf32>, vector<8x32xf32>, vector<8x32xf32> -> vector<8x32xf32>
    %50 = arith.addf %11, %49 : vector<8x32xf32>
    %51 = vector.extract_strided_slice %9 {offsets = [1, 0], sizes = [1, 32], strides = [1, 1]} : vector<4x32xf32> to vector<1x32xf32>
    %52 = vector.broadcast %51 : vector<1x32xf32> to vector<16x32xf32>
    %53 = arith.mulf %7, %52 : vector<16x32xf32>
    %54 = vector.broadcast %51 : vector<1x32xf32> to vector<16x32xf32>
    %55 = arith.mulf %8, %54 : vector<16x32xf32>
    %56 = vector.extract_strided_slice %6 {offsets = [0, 0], sizes = [8, 32], strides = [1, 1]} : vector<16x32xf32> to vector<8x32xf32>
    %57 = vector.extract_strided_slice %53 {offsets = [0, 0], sizes = [8, 32], strides = [1, 1]} : vector<16x32xf32> to vector<8x32xf32>
    %cst_19 = arith.constant dense<0.000000e+00> : vector<8x8xf32>
    %58 = tpu.matmul %56, %57, %cst_19 {dimension_numbers = #tpu.dot_dimension_numbers<[1], [1], [0], [0], [0, 0, 1, 0], [], []>} : vector<8x32xf32>, vector<8x32xf32>, vector<8x8xf32> -> vector<8x8xf32>
    %cst_20 = arith.constant dense<0xFF800000> : vector<8xf32>
    %59 = vector.multi_reduction <maximumf>, %58, %cst_20 [1] : vector<8x8xf32> to vector<8xf32>
    %60 = vector.shape_cast %59 : vector<8xf32> to vector<8x1xf32>
    %61 = vector.broadcast %60 : vector<8x1xf32> to vector<8x8xf32>
    %62 = arith.subf %58, %61 : vector<8x8xf32>
    %63 = math.exp %62 : vector<8x8xf32>
    %cst_21 = arith.constant dense<0.000000e+00> : vector<8xf32>
    %64 = vector.multi_reduction <add>, %63, %cst_21 [1] : vector<8x8xf32> to vector<8xf32>
    %65 = vector.shape_cast %64 : vector<8xf32> to vector<8x1xf32>
    %cst_22 = arith.constant 1.000000e+00 : f32
    %66 = vector.broadcast %cst_22 : f32 to vector<8x1xf32>
    %67 = arith.divf %66, %65 : vector<8x1xf32>
    %68 = vector.broadcast %67 : vector<8x1xf32> to vector<8x8xf32>
    %69 = arith.mulf %63, %68 : vector<8x8xf32>
    %70 = vector.extract_strided_slice %55 {offsets = [0, 0], sizes = [8, 32], strides = [1, 1]} : vector<16x32xf32> to vector<8x32xf32>
    %cst_23 = arith.constant dense<0.000000e+00> : vector<8x32xf32>
    %71 = tpu.matmul %69, %70, %cst_23 {dimension_numbers = #tpu.dot_dimension_numbers<[1], [0], [0], [1], [0, 0, 1, 1], [], []>} : vector<8x8xf32>, vector<8x32xf32>, vector<8x32xf32> -> vector<8x32xf32>
    %72 = arith.addf %33, %71 : vector<8x32xf32>
    %73 = vector.extract_strided_slice %6 {offsets = [8, 0], sizes = [8, 32], strides = [1, 1]} : vector<16x32xf32> to vector<8x32xf32>
    %74 = vector.extract_strided_slice %53 {offsets = [8, 0], sizes = [8, 32], strides = [1, 1]} : vector<16x32xf32> to vector<8x32xf32>
    %cst_24 = arith.constant dense<0.000000e+00> : vector<8x8xf32>
    %75 = tpu.matmul %73, %74, %cst_24 {dimension_numbers = #tpu.dot_dimension_numbers<[1], [1], [0], [0], [0, 0, 1, 0], [], []>} : vector<8x32xf32>, vector<8x32xf32>, vector<8x8xf32> -> vector<8x8xf32>
    %cst_25 = arith.constant dense<0xFF800000> : vector<8xf32>
    %76 = vector.multi_reduction <maximumf>, %75, %cst_25 [1] : vector<8x8xf32> to vector<8xf32>
    %77 = vector.shape_cast %76 : vector<8xf32> to vector<8x1xf32>
    %78 = vector.broadcast %77 : vector<8x1xf32> to vector<8x8xf32>
    %79 = arith.subf %75, %78 : vector<8x8xf32>
    %80 = math.exp %79 : vector<8x8xf32>
    %cst_26 = arith.constant dense<0.000000e+00> : vector<8xf32>
    %81 = vector.multi_reduction <add>, %80, %cst_26 [1] : vector<8x8xf32> to vector<8xf32>
    %82 = vector.shape_cast %81 : vector<8xf32> to vector<8x1xf32>
    %cst_27 = arith.constant 1.000000e+00 : f32
    %83 = vector.broadcast %cst_27 : f32 to vector<8x1xf32>
    %84 = arith.divf %83, %82 : vector<8x1xf32>
    %85 = vector.broadcast %84 : vector<8x1xf32> to vector<8x8xf32>
    %86 = arith.mulf %80, %85 : vector<8x8xf32>
    %87 = vector.extract_strided_slice %55 {offsets = [8, 0], sizes = [8, 32], strides = [1, 1]} : vector<16x32xf32> to vector<8x32xf32>
    %cst_28 = arith.constant dense<0.000000e+00> : vector<8x32xf32>
    %88 = tpu.matmul %86, %87, %cst_28 {dimension_numbers = #tpu.dot_dimension_numbers<[1], [0], [0], [1], [0, 0, 1, 1], [], []>} : vector<8x8xf32>, vector<8x32xf32>, vector<8x32xf32> -> vector<8x32xf32>
    %89 = arith.addf %50, %88 : vector<8x32xf32>
    %90 = vector.extract_strided_slice %9 {offsets = [2, 0], sizes = [1, 32], strides = [1, 1]} : vector<4x32xf32> to vector<1x32xf32>
    %91 = vector.broadcast %90 : vector<1x32xf32> to vector<16x32xf32>
    %92 = arith.mulf %7, %91 : vector<16x32xf32>
    %93 = vector.broadcast %90 : vector<1x32xf32> to vector<16x32xf32>
    %94 = arith.mulf %8, %93 : vector<16x32xf32>
    %95 = vector.extract_strided_slice %6 {offsets = [0, 0], sizes = [8, 32], strides = [1, 1]} : vector<16x32xf32> to vector<8x32xf32>
    %96 = vector.extract_strided_slice %92 {offsets = [0, 0], sizes = [8, 32], strides = [1, 1]} : vector<16x32xf32> to vector<8x32xf32>
    %cst_29 = arith.constant dense<0.000000e+00> : vector<8x8xf32>
    %97 = tpu.matmul %95, %96, %cst_29 {dimension_numbers = #tpu.dot_dimension_numbers<[1], [1], [0], [0], [0, 0, 1, 0], [], []>} : vector<8x32xf32>, vector<8x32xf32>, vector<8x8xf32> -> vector<8x8xf32>
    %cst_30 = arith.constant dense<0xFF800000> : vector<8xf32>
    %98 = vector.multi_reduction <maximumf>, %97, %cst_30 [1] : vector<8x8xf32> to vector<8xf32>
    %99 = vector.shape_cast %98 : vector<8xf32> to vector<8x1xf32>
    %100 = vector.broadcast %99 : vector<8x1xf32> to vector<8x8xf32>
    %101 = arith.subf %97, %100 : vector<8x8xf32>
    %102 = math.exp %101 : vector<8x8xf32>
    %cst_31 = arith.constant dense<0.000000e+00> : vector<8xf32>
    %103 = vector.multi_reduction <add>, %102, %cst_31 [1] : vector<8x8xf32> to vector<8xf32>
    %104 = vector.shape_cast %103 : vector<8xf32> to vector<8x1xf32>
    %cst_32 = arith.constant 1.000000e+00 : f32
    %105 = vector.broadcast %cst_32 : f32 to vector<8x1xf32>
    %106 = arith.divf %105, %104 : vector<8x1xf32>
    %107 = vector.broadcast %106 : vector<8x1xf32> to vector<8x8xf32>
    %108 = arith.mulf %102, %107 : vector<8x8xf32>
    %109 = vector.extract_strided_slice %94 {offsets = [0, 0], sizes = [8, 32], strides = [1, 1]} : vector<16x32xf32> to vector<8x32xf32>
    %cst_33 = arith.constant dense<0.000000e+00> : vector<8x32xf32>
    %110 = tpu.matmul %108, %109, %cst_33 {dimension_numbers = #tpu.dot_dimension_numbers<[1], [0], [0], [1], [0, 0, 1, 1], [], []>} : vector<8x8xf32>, vector<8x32xf32>, vector<8x32xf32> -> vector<8x32xf32>
    %111 = arith.addf %72, %110 : vector<8x32xf32>
    %112 = vector.extract_strided_slice %6 {offsets = [8, 0], sizes = [8, 32], strides = [1, 1]} : vector<16x32xf32> to vector<8x32xf32>
    %113 = vector.extract_strided_slice %92 {offsets = [8, 0], sizes = [8, 32], strides = [1, 1]} : vector<16x32xf32> to vector<8x32xf32>
    %cst_34 = arith.constant dense<0.000000e+00> : vector<8x8xf32>
    %114 = tpu.matmul %112, %113, %cst_34 {dimension_numbers = #tpu.dot_dimension_numbers<[1], [1], [0], [0], [0, 0, 1, 0], [], []>} : vector<8x32xf32>, vector<8x32xf32>, vector<8x8xf32> -> vector<8x8xf32>
    %cst_35 = arith.constant dense<0xFF800000> : vector<8xf32>
    %115 = vector.multi_reduction <maximumf>, %114, %cst_35 [1] : vector<8x8xf32> to vector<8xf32>
    %116 = vector.shape_cast %115 : vector<8xf32> to vector<8x1xf32>
    %117 = vector.broadcast %116 : vector<8x1xf32> to vector<8x8xf32>
    %118 = arith.subf %114, %117 : vector<8x8xf32>
    %119 = math.exp %118 : vector<8x8xf32>
    %cst_36 = arith.constant dense<0.000000e+00> : vector<8xf32>
    %120 = vector.multi_reduction <add>, %119, %cst_36 [1] : vector<8x8xf32> to vector<8xf32>
    %121 = vector.shape_cast %120 : vector<8xf32> to vector<8x1xf32>
    %cst_37 = arith.constant 1.000000e+00 : f32
    %122 = vector.broadcast %cst_37 : f32 to vector<8x1xf32>
    %123 = arith.divf %122, %121 : vector<8x1xf32>
    %124 = vector.broadcast %123 : vector<8x1xf32> to vector<8x8xf32>
    %125 = arith.mulf %119, %124 : vector<8x8xf32>
    %126 = vector.extract_strided_slice %94 {offsets = [8, 0], sizes = [8, 32], strides = [1, 1]} : vector<16x32xf32> to vector<8x32xf32>
    %cst_38 = arith.constant dense<0.000000e+00> : vector<8x32xf32>
    %127 = tpu.matmul %125, %126, %cst_38 {dimension_numbers = #tpu.dot_dimension_numbers<[1], [0], [0], [1], [0, 0, 1, 1], [], []>} : vector<8x8xf32>, vector<8x32xf32>, vector<8x32xf32> -> vector<8x32xf32>
    %128 = arith.addf %89, %127 : vector<8x32xf32>
    %129 = vector.extract_strided_slice %9 {offsets = [3, 0], sizes = [1, 32], strides = [1, 1]} : vector<4x32xf32> to vector<1x32xf32>
    %130 = vector.broadcast %129 : vector<1x32xf32> to vector<16x32xf32>
    %131 = arith.mulf %7, %130 : vector<16x32xf32>
    %132 = vector.broadcast %129 : vector<1x32xf32> to vector<16x32xf32>
    %133 = arith.mulf %8, %132 : vector<16x32xf32>
    %134 = vector.extract_strided_slice %6 {offsets = [0, 0], sizes = [8, 32], strides = [1, 1]} : vector<16x32xf32> to vector<8x32xf32>
    %135 = vector.extract_strided_slice %131 {offsets = [0, 0], sizes = [8, 32], strides = [1, 1]} : vector<16x32xf32> to vector<8x32xf32>
    %cst_39 = arith.constant dense<0.000000e+00> : vector<8x8xf32>
    %136 = tpu.matmul %134, %135, %cst_39 {dimension_numbers = #tpu.dot_dimension_numbers<[1], [1], [0], [0], [0, 0, 1, 0], [], []>} : vector<8x32xf32>, vector<8x32xf32>, vector<8x8xf32> -> vector<8x8xf32>
    %cst_40 = arith.constant dense<0xFF800000> : vector<8xf32>
    %137 = vector.multi_reduction <maximumf>, %136, %cst_40 [1] : vector<8x8xf32> to vector<8xf32>
    %138 = vector.shape_cast %137 : vector<8xf32> to vector<8x1xf32>
    %139 = vector.broadcast %138 : vector<8x1xf32> to vector<8x8xf32>
    %140 = arith.subf %136, %139 : vector<8x8xf32>
    %141 = math.exp %140 : vector<8x8xf32>
    %cst_41 = arith.constant dense<0.000000e+00> : vector<8xf32>
    %142 = vector.multi_reduction <add>, %141, %cst_41 [1] : vector<8x8xf32> to vector<8xf32>
    %143 = vector.shape_cast %142 : vector<8xf32> to vector<8x1xf32>
    %cst_42 = arith.constant 1.000000e+00 : f32
    %144 = vector.broadcast %cst_42 : f32 to vector<8x1xf32>
    %145 = arith.divf %144, %143 : vector<8x1xf32>
    %146 = vector.broadcast %145 : vector<8x1xf32> to vector<8x8xf32>
    %147 = arith.mulf %141, %146 : vector<8x8xf32>
    %148 = vector.extract_strided_slice %133 {offsets = [0, 0], sizes = [8, 32], strides = [1, 1]} : vector<16x32xf32> to vector<8x32xf32>
    %cst_43 = arith.constant dense<0.000000e+00> : vector<8x32xf32>
    %149 = tpu.matmul %147, %148, %cst_43 {dimension_numbers = #tpu.dot_dimension_numbers<[1], [0], [0], [1], [0, 0, 1, 1], [], []>} : vector<8x8xf32>, vector<8x32xf32>, vector<8x32xf32> -> vector<8x32xf32>
    %150 = arith.addf %111, %149 : vector<8x32xf32>
    %151 = vector.extract_strided_slice %6 {offsets = [8, 0], sizes = [8, 32], strides = [1, 1]} : vector<16x32xf32> to vector<8x32xf32>
    %152 = vector.extract_strided_slice %131 {offsets = [8, 0], sizes = [8, 32], strides = [1, 1]} : vector<16x32xf32> to vector<8x32xf32>
    %cst_44 = arith.constant dense<0.000000e+00> : vector<8x8xf32>
    %153 = tpu.matmul %151, %152, %cst_44 {dimension_numbers = #tpu.dot_dimension_numbers<[1], [1], [0], [0], [0, 0, 1, 0], [], []>} : vector<8x32xf32>, vector<8x32xf32>, vector<8x8xf32> -> vector<8x8xf32>
    %cst_45 = arith.constant dense<0xFF800000> : vector<8xf32>
    %154 = vector.multi_reduction <maximumf>, %153, %cst_45 [1] : vector<8x8xf32> to vector<8xf32>
    %155 = vector.shape_cast %154 : vector<8xf32> to vector<8x1xf32>
    %156 = vector.broadcast %155 : vector<8x1xf32> to vector<8x8xf32>
    %157 = arith.subf %153, %156 : vector<8x8xf32>
    %158 = math.exp %157 : vector<8x8xf32>
    %cst_46 = arith.constant dense<0.000000e+00> : vector<8xf32>
    %159 = vector.multi_reduction <add>, %158, %cst_46 [1] : vector<8x8xf32> to vector<8xf32>
    %160 = vector.shape_cast %159 : vector<8xf32> to vector<8x1xf32>
    %cst_47 = arith.constant 1.000000e+00 : f32
    %161 = vector.broadcast %cst_47 : f32 to vector<8x1xf32>
    %162 = arith.divf %161, %160 : vector<8x1xf32>
    %163 = vector.broadcast %162 : vector<8x1xf32> to vector<8x8xf32>
    %164 = arith.mulf %158, %163 : vector<8x8xf32>
    %165 = vector.extract_strided_slice %133 {offsets = [8, 0], sizes = [8, 32], strides = [1, 1]} : vector<16x32xf32> to vector<8x32xf32>
    %cst_48 = arith.constant dense<0.000000e+00> : vector<8x32xf32>
    %166 = tpu.matmul %164, %165, %cst_48 {dimension_numbers = #tpu.dot_dimension_numbers<[1], [0], [0], [1], [0, 0, 1, 1], [], []>} : vector<8x8xf32>, vector<8x32xf32>, vector<8x32xf32> -> vector<8x32xf32>
    %167 = arith.addf %128, %166 : vector<8x32xf32>
    %168 = tpu.concatenate %150, %167 in 0 : vector<8x32xf32>, vector<8x32xf32> -> vector<16x32xf32>
    %169 = tpu.concatenate %30, %69, %108, %147 in 1 : vector<8x8xf32>, vector<8x8xf32>, vector<8x8xf32>, vector<8x8xf32> -> vector<8x32xf32>
    %170 = tpu.concatenate %47, %86, %125, %164 in 1 : vector<8x8xf32>, vector<8x8xf32>, vector<8x8xf32>, vector<8x8xf32> -> vector<8x32xf32>
    %171 = tpu.concatenate %169, %170 in 0 : vector<8x32xf32>, vector<8x32xf32> -> vector<16x32xf32>
    %c0_49 = arith.constant 0 : index
    %c0_50 = arith.constant 0 : index
    %172 = vector.load %arg8[%c0_49, %c0_50] : memref<16x32xf32, #tpu.memory_space<vmem>>, vector<16x32xf32>
    tpu.vector_store %arg8[%c0_49, %c0_50], %171 {strides = array<i32>} : memref<16x32xf32, #tpu.memory_space<vmem>>, vector<16x32xf32>,
    %c0_51 = arith.constant 0 : index
    %c0_52 = arith.constant 0 : index
    %173 = vector.load %arg5[%c0_51, %c0_52] : memref<32x32xf32, #tpu.memory_space<vmem>>, vector<32x32xf32>
    %cst_53 = arith.constant dense<0.000000e+00> : vector<16x32xf32>
    %174 = tpu.matmul %168, %173, %cst_53 {dimension_numbers = #tpu.dot_dimension_numbers<[1], [0], [0], [1], [0, 0, 1, 1], [], []>} : vector<16x32xf32>, vector<32x32xf32>, vector<16x32xf32> -> vector<16x32xf32>
    %c0_54 = arith.constant 0 : index
    %c0_55 = arith.constant 0 : index
    %175 = vector.load %arg6[%c0_54, %c0_55] : memref<1x32xf32, #tpu.memory_space<vmem>>, vector<1x32xf32>
    %176 = vector.broadcast %175 : vector<1x32xf32> to vector<16x32xf32>
    %177 = arith.addf %174, %176 : vector<16x32xf32>
    %c0_56 = arith.constant 0 : index
    %c0_57 = arith.constant 0 : index
    %178 = vector.load %arg7[%c0_56, %c0_57] : memref<16x32xf32, #tpu.memory_space<vmem>>, vector<16x32xf32>
    tpu.vector_store %arg7[%c0_56, %c0_57], %177 {strides = array<i32>} : memref<16x32xf32, #tpu.memory_space<vmem>>, vector<16x32xf32>,
    return
  }
  func.func @transform_0(%arg0: i32) -> (i32, i32) {
    %c0_i32 = arith.constant 0 : i32
    %c0_i32_0 = arith.constant 0 : i32
    %c0_i32_1 = arith.constant 0 : i32
    return %c0_i32, %c0_i32_0 : i32, i32
  }
  func.func @transform_1(%arg0: i32) -> (i32, i32) {
    %c0_i32 = arith.constant 0 : i32
    %c0_i32_0 = arith.constant 0 : i32
    %c0_i32_1 = arith.constant 0 : i32
    return %c0_i32, %c0_i32_0 : i32, i32
  }
  func.func @transform_2(%arg0: i32) -> (i32, i32) {
    %c0_i32 = arith.constant 0 : i32
    %c0_i32_0 = arith.constant 0 : i32
    %c0_i32_1 = arith.constant 0 : i32
    return %c0_i32, %c0_i32_0 : i32, i32
  }
  func.func @transform_3(%arg0: i32) -> (i32, i32) {
    %c0_i32 = arith.constant 0 : i32
    %c0_i32_0 = arith.constant 0 : i32
    %c0_i32_1 = arith.constant 0 : i32
    return %c0_i32, %c0_i32_0 : i32, i32
  }
  func.func @transform_4(%arg0: i32) -> (i32, i32) {
    %c0_i32 = arith.constant 0 : i32
    %c0_i32_0 = arith.constant 0 : i32
    %c0_i32_1 = arith.constant 0 : i32
    return %c0_i32, %c0_i32_0 : i32, i32
  }
  func.func @transform_5(%arg0: i32) -> (i32, i32) {
    %c0_i32 = arith.constant 0 : i32
    %c0_i32_0 = arith.constant 0 : i32
    %c0_i32_1 = arith.constant 0 : i32
    return %c0_i32, %c0_i32_0 : i32, i32
  }
  func.func @transform_6(%arg0: i32) -> (i32, i32) {
    %c0_i32 = arith.constant 0 : i32
    %c0_i32_0 = arith.constant 0 : i32
    %c0_i32_1 = arith.constant 0 : i32
    return %c0_i32, %c0_i32_0 : i32, i32
  }
  func.func @transform_7(%arg0: i32) -> (i32, i32) {
    %c0_i32 = arith.constant 0 : i32
    %c0_i32_0 = arith.constant 0 : i32
    %c0_i32_1 = arith.constant 0 : i32
    return %c0_i32, %c0_i32_0 : i32, i32
  }
}

</mosaic_0001>

<llo_original>
// kernel: tpu_custom_call.1
$region0: #{tpu_custom_call.1}
  #allocation0 [shape = 'u32[]', space=smem, size = 0x4, offset = 0x4, fixed_abs, tag = 'smem constant byte address 0x4 - core index']
  #allocation1 [shape = 'u32[144,128]{1,0:T(1,128)}', space=vmem, size = 0x12000, scoped, tag = 'internal scratch']
  %s0 = inlined_call_operand.hbm [shape: f32[16,32], index: 0, kind: input, shape index: {}]
  %s1 = inlined_call_operand.hbm [shape: f32[32,96], index: 1, kind: input, shape index: {}]
  %s2 = inlined_call_operand.vmem [shape: f32[1,96], index: 2, kind: input, shape index: {}]
  %s3 = inlined_call_operand.vmem [shape: f32[4,32], index: 3, kind: input, shape index: {}]
  %s4 = inlined_call_operand.hbm [shape: f32[32,32], index: 4, kind: input, shape index: {}]
  %s5 = inlined_call_operand.vmem [shape: f32[1,32], index: 5, kind: input, shape index: {}]
  %s6 = inlined_call_operand.hbm [shape: f32[16,32], index: 6, kind: output, shape index: {0}]
  %s7 = inlined_call_operand.hbm [shape: f32[16,32], index: 7, kind: output, shape index: {1}]
  %8 = xla_tuple %s6, %s7
  %s9 = sld [smem:[#allocation0]]
  $region54: #{tpu_custom_call.1} parent=0
    _
  %s11 = ssub.s32 1, %s9
  %s12 = scalar_select 0, %s11, %s9
  $region1: #{tpu_custom_call.1} parent=0
    #allocation2 [shape = 'u8[8192]{0}', space=vmem, size = 0x2000, scoped, tag = 'input window, operand 0, single buffered']
    #allocation3 [shape = 's32[1]{0}', space=sflag, size = 0x4, scoped, tag = 'scoped memory for tpu_custom_call.1']
    #allocation4 [shape = 's32[1]{0}', space=sflag, size = 0x4, scoped, tag = 'scoped memory for tpu_custom_call.1']
    #allocation5 [shape = 'u8[16384]{0}', space=vmem, size = 0x4000, scoped, tag = 'input window, operand 1, single buffered']
    #allocation6 [shape = 's32[1]{0}', space=sflag, size = 0x4, scoped, tag = 'scoped memory for tpu_custom_call.1']
    #allocation7 [shape = 'u8[16384]{0}', space=vmem, size = 0x4000, scoped, tag = 'input window, operand 4, single buffered']
    #allocation8 [shape = 'u8[8192]{0}', space=vmem, size = 0x2000, scoped, tag = 'output window, operand 0, single buffered']
    #allocation9 [shape = 'u8[8192]{0}', space=vmem, size = 0x2000, scoped, tag = 'output window, operand 1, single buffered']
    #allocation10 [shape = 's32[1]{0}', space=sflag, size = 0x4, scoped, tag = 'scoped memory for tpu_custom_call.1']
    %13 = vsyncpa [#allocation3], 0
    %14 = vsyncpa [#allocation6], 0
    %15 = vsyncpa [#allocation4], 0
    %16 = vsyncpa [#allocation10], 0
    // Predicated region
    $region2: #{tpu_custom_call.1} parent=1 // pred_check
      _
    $region3: #{tpu_custom_call.1} parent=1 // pred_check_branch
      %18 = sbr.rel (0) target = $region5
    $region4: #{tpu_custom_call.1} parent=1 // pred_region
      %s20 = ssub.s32 256, 256
      %21 = vsyncadd [#allocation3], %s20
      %s22 = sshll.u32 [#allocation2], 4
      %s23 = int_to_ptr.vmem [resolvable:$true] %s22
      %28 = dma.hbm_to_vmem [thread:$0]  %s0, 256, %s23, [#allocation3], 128, 128, 8
    $region5: #{tpu_custom_call.1} parent=1 // pred_fallthru
      _
    // Predicated region
    $region6: #{tpu_custom_call.1} parent=1 // pred_check
      _
    $region7: #{tpu_custom_call.1} parent=1 // pred_check_branch
      %30 = sbr.rel (0) target = $region9
    $region8: #{tpu_custom_call.1} parent=1 // pred_region
      %s32 = ssub.s32 512, 512
      %33 = vsyncadd [#allocation6], %s32
      %s34 = sshll.u32 [#allocation5], 4
      %s35 = int_to_ptr.vmem [resolvable:$true] %s34
      %40 = dma.hbm_to_vmem [thread:$0]  %s1, 512, %s35, [#allocation6], 128, 128, 8
    $region9: #{tpu_custom_call.1} parent=1 // pred_fallthru
      _
    // Predicated region
    $region10: #{tpu_custom_call.1} parent=1 // pred_check
      _
    $region11: #{tpu_custom_call.1} parent=1 // pred_check_branch
      %42 = sbr.rel (0) target = $region13
    $region12: #{tpu_custom_call.1} parent=1 // pred_region
      _
    $region13: #{tpu_custom_call.1} parent=1 // pred_fallthru
      _
    // Predicated region
    $region14: #{tpu_custom_call.1} parent=1 // pred_check
      _
    $region15: #{tpu_custom_call.1} parent=1 // pred_check_branch
      %44 = sbr.rel (0) target = $region17
    $region16: #{tpu_custom_call.1} parent=1 // pred_region
      _
    $region17: #{tpu_custom_call.1} parent=1 // pred_fallthru
      _
    // Predicated region
    $region18: #{tpu_custom_call.1} parent=1 // pred_check
      _
    $region19: #{tpu_custom_call.1} parent=1 // pred_check_branch
      %46 = sbr.rel (0) target = $region21
    $region20: #{tpu_custom_call.1} parent=1 // pred_region
      %s48 = ssub.s32 512, 512
      %49 = vsyncadd [#allocation6], %s48
      %s50 = sshll.u32 [#allocation7], 4
      %s51 = int_to_ptr.vmem [resolvable:$true] %s50
      %56 = dma.hbm_to_vmem [thread:$0]  %s4, 512, %s51, [#allocation6], 128, 128, 8
    $region21: #{tpu_custom_call.1} parent=1 // pred_fallthru
      _
    // Predicated region
    $region22: #{tpu_custom_call.1} parent=1 // pred_check
      _
    $region23: #{tpu_custom_call.1} parent=1 // pred_check_branch
      %58 = sbr.rel (0) target = $region25
    $region24: #{tpu_custom_call.1} parent=1 // pred_region
      _
    $region25: #{tpu_custom_call.1} parent=1 // pred_fallthru
      _
    // Predicated region
    $region26: #{tpu_custom_call.1} parent=1 // pred_check
      _
    $region27: #{tpu_custom_call.1} parent=1 // pred_check_branch
      %60 = sbr.rel (0) target = $region29
    $region28: #{tpu_custom_call.1} parent=1 // pred_region
      %61 = dma.done [#allocation3], 256
    $region29: #{tpu_custom_call.1} parent=1 // pred_fallthru
      _
    // Predicated region
    $region30: #{tpu_custom_call.1} parent=1 // pred_check
      _
    $region31: #{tpu_custom_call.1} parent=1 // pred_check_branch
      %63 = sbr.rel (0) target = $region33
    $region32: #{tpu_custom_call.1} parent=1 // pred_region
      %64 = dma.done [#allocation6], 512
    $region33: #{tpu_custom_call.1} parent=1 // pred_fallthru
      _
    // Predicated region
    $region34: #{tpu_custom_call.1} parent=1 // pred_check
      _
    $region35: #{tpu_custom_call.1} parent=1 // pred_check_branch
      %66 = sbr.rel (0) target = $region37
    $region36: #{tpu_custom_call.1} parent=1 // pred_region
      %67 = dma.done [#allocation6], 512
    $region37: #{tpu_custom_call.1} parent=1 // pred_fallthru
      _
    %v68 = vld [vmem:[#allocation2] sm:$0xff]
    %v69 = vld [vmem:[#allocation2 + $0x8] sm:$0xff]
    %v70 = vld [vmem:[#allocation5] sm:$0xff]
    %v71 = vld [vmem:[#allocation5 + $0x8] sm:$0xff]
    %v72 = vld [vmem:[#allocation5 + $0x10] sm:$0xff]
    %v73 = vld [vmem:[#allocation5 + $0x18] sm:$0xff]
    %v74 = vld [vmem:[%s2] sm:$0x1]
    %v76 = vlaneseq
    %v77 = vshrl.u32 %v76, 7
    %v78 = vsub.s32 0, %v77
    %v79 = vrot.slane %v74, %v78
    %vm81 = vcmask 261120
    %v83 = vsel %vm81, %v68, 0
    %v86 = vsel %vm81, %v69, 0
    %88 = vmatprep.subr.mxu0 0.0
    %89 = vmatpush1.msra.mxu0 %v70
    %90 = vmatprep.subr.mxu0 0.0
    %91 = vmatpush1.msra.mxu0 %v71
    %92 = vmatprep.subr.mxu0 0.0
    %93 = vmatpush1.msra.mxu0 %v72
    %94 = vmatprep.subr.mxu0 0.0
    %95 = vmatpush1.msra.mxu0 %v73
    %96 = vmatprep.subr.mxu0 0.0
    %97 = vmatpush1.msra.mxu0 0.0
    %98 = vmatprep.subr.mxu0 0.0
    %99 = vmatpush1.msra.mxu0 0.0
    %100 = vmatprep.subr.mxu0 0.0
    %101 = vmatpush1.msra.mxu0 0.0
    %102 = vmatprep.subr.mxu0 0.0
    %103 = vmatpush1.msra.mxu0 0.0
    %104 = vmatprep.subr.mxu0 0.0
    %105 = vmatpush1.msra.mxu0 0.0
    %106 = vmatprep.subr.mxu0 0.0
    %107 = vmatpush1.msra.mxu0 0.0
    %108 = vmatprep.subr.mxu0 0.0
    %109 = vmatpush1.msra.mxu0 0.0
    %110 = vmatprep.subr.mxu0 0.0
    %111 = vmatpush1.msra.mxu0 0.0
    %112 = vmatprep.subr.mxu0 0.0
    %113 = vmatpush1.msra.mxu0 0.0
    %114 = vmatprep.subr.mxu0 0.0
    %115 = vmatpush1.msra.mxu0 0.0
    %116 = vmatprep.subr.mxu0 0.0
    %117 = vmatpush1.msra.mxu0 0.0
    %118 = vmatprep.subr.mxu0 0.0
    %119 = vmatpush1.msra.mxu0 0.0
    %120 = vmatprep.subr.mxu0 0.0
    %121 = vmatpush1.msra.mxu0 0.0
    %122 = vmatprep.subr.mxu0 0.0
    %123 = vmatpush1.msra.mxu0 0.0
    %124 = vmatprep.subr.mxu0 0.0
    %125 = vmatpush1.msra.mxu0 0.0
    %126 = vmatprep.subr.mxu0 0.0
    %127 = vmatpush1.msra.mxu0 0.0
    %128 = vmatprep.subr.mxu0 0.0
    %129 = vmatpush1.msra.mxu0 0.0
    %130 = vmatprep.subr.mxu0 0.0
    %131 = vmatpush1.msra.mxu0 0.0
    %132 = vmatprep.subr.mxu0 0.0
    %133 = vmatpush1.msra.mxu0 0.0
    %134 = vmatprep.subr.mxu0 0.0
    %135 = vmatpush1.msra.mxu0 0.0
    %136 = vmatprep.subr.mxu0 0.0
    %137 = vmatpush1.msra.mxu0 0.0
    %138 = vmatprep.subr.mxu0 0.0
    %139 = vmatpush1.msra.mxu0 0.0
    %140 = vmatprep.subr.mxu0 0.0
    %141 = vmatpush1.msra.mxu0 0.0
    %142 = vmatprep.subr.mxu0 0.0
    %143 = vmatpush1.msra.mxu0 0.0
    %144 = vmatprep.subr.mxu0 0.0
    %145 = vmatpush1.msra.mxu0 0.0
    %146 = vmatprep.subr.mxu0 0.0
    %147 = vmatpush1.msra.mxu0 0.0
    %148 = vmatprep.subr.mxu0 0.0
    %149 = vmatpush1.msra.mxu0 0.0
    %150 = vmatprep.subr.mxu0 0.0
    %151 = vmatpush1.msra.mxu0 0.0
    %152 = vmatprep.mubr.f32.mxu0 0.0
    %153 = vmatmul.mubr.f32.gmra.mrb[0].mxu0 %v83
    %v154 = vpop.f32.mrb[0].mxu0
    %v155 = vadd.f32 %v79, %v154
    %v156 = vpop.f32.mrb[0].mxu0
    %157 = vmatprep.mubr.f32.mxu0 0.0
    %158 = vmatmul.mubr.f32.gmra.mrb[0].mxu0 %v86
    %v159 = vpop.f32.mrb[0].mxu0
    %v160 = vadd.f32 %v79, %v159
    %v161 = vpop.f32.mrb[0].mxu0
    %162 = vdwg.mxu0
    %v163 = vld [vmem:[%s3] sm:$0xf]
    %v164 = vlaneseq
    %v165 = vshrl.u32 %v164, 7
    %v166 = vsub.s32 0, %v165
    %v167 = vrot.slane %v163, %v166
    %169 = vrot.lane.b32.xlu0 %v167, 32
    %v170 = vpop.permute.xlu0 %169
    %v172 = vmul.f32 %v155, %v170
    %v173 = vmul.f32 %v160, %v170
    %174 = vrot.lane.b32.xlu0 %v167, 64
    %v175 = vpop.permute.xlu0 %174
    %v177 = vmul.f32 %v155, %v175
    %v178 = vmul.f32 %v160, %v175
    %180 = vrot.lane.b32.xlu0 %v172, 96
    %v181 = vpop.permute.xlu0 %180
    %v183 = vsel %vm81, %v155, 0
    %v185 = vsel %vm81, %v181, 0
    %187 = vmatprep.subr.mxu0 0.0
    %188 = vmatpush1.xpose.msra.mxu0 %v185
    %189 = vmatprep.subr.mxu0 0.0
    %190 = vmatpush1.xpose.msra.mxu0 0.0
    %191 = vmatprep.subr.mxu0 0.0
    %192 = vmatpush1.xpose.msra.mxu0 0.0
    %193 = vmatprep.subr.mxu0 0.0
    %194 = vmatpush1.xpose.msra.mxu0 0.0
    %195 = vmatprep.subr.mxu0 0.0
    %196 = vmatpush1.xpose.msra.mxu0 0.0
    %197 = vmatprep.subr.mxu0 0.0
    %198 = vmatpush1.xpose.msra.mxu0 0.0
    %199 = vmatprep.subr.mxu0 0.0
    %200 = vmatpush1.xpose.msra.mxu0 0.0
    %201 = vmatprep.subr.mxu0 0.0
    %202 = vmatpush1.xpose.msra.mxu0 0.0
    %203 = vmatprep.subr.mxu0 0.0
    %204 = vmatpush1.xpose.msra.mxu0 0.0
    %205 = vmatprep.subr.mxu0 0.0
    %206 = vmatpush1.xpose.msra.mxu0 0.0
    %207 = vmatprep.subr.mxu0 0.0
    %208 = vmatpush1.xpose.msra.mxu0 0.0
    %209 = vmatprep.subr.mxu0 0.0
    %210 = vmatpush1.xpose.msra.mxu0 0.0
    %211 = vmatprep.subr.mxu0 0.0
    %212 = vmatpush1.xpose.msra.mxu0 0.0
    %213 = vmatprep.subr.mxu0 0.0
    %214 = vmatpush1.xpose.msra.mxu0 0.0
    %215 = vmatprep.subr.mxu0 0.0
    %216 = vmatpush1.xpose.msra.mxu0 0.0
    %217 = vmatprep.subr.mxu0 0.0
    %218 = vmatpush1.xpose.msra.mxu0 0.0
    %219 = vmatprep.subr.mxu0 0.0
    %220 = vmatpush1.xpose.msra.mxu0 0.0
    %221 = vmatprep.subr.mxu0 0.0
    %222 = vmatpush1.xpose.msra.mxu0 0.0
    %223 = vmatprep.subr.mxu0 0.0
    %224 = vmatpush1.xpose.msra.mxu0 0.0
    %225 = vmatprep.subr.mxu0 0.0
    %226 = vmatpush1.xpose.msra.mxu0 0.0
    %227 = vmatprep.subr.mxu0 0.0
    %228 = vmatpush1.xpose.msra.mxu0 0.0
    %229 = vmatprep.subr.mxu0 0.0
    %230 = vmatpush1.xpose.msra.mxu0 0.0
    %231 = vmatprep.subr.mxu0 0.0
    %232 = vmatpush1.xpose.msra.mxu0 0.0
    %233 = vmatprep.subr.mxu0 0.0
    %234 = vmatpush1.xpose.msra.mxu0 0.0
    %235 = vmatprep.subr.mxu0 0.0
    %236 = vmatpush1.xpose.msra.mxu0 0.0
    %237 = vmatprep.subr.mxu0 0.0
    %238 = vmatpush1.xpose.msra.mxu0 0.0
    %239 = vmatprep.subr.mxu0 0.0
    %240 = vmatpush1.xpose.msra.mxu0 0.0
    %241 = vmatprep.subr.mxu0 0.0
    %242 = vmatpush1.xpose.msra.mxu0 0.0
    %243 = vmatprep.subr.mxu0 0.0
    %244 = vmatpush1.xpose.msra.mxu0 0.0
    %245 = vmatprep.subr.mxu0 0.0
    %246 = vmatpush1.xpose.msra.mxu0 0.0
    %247 = vmatprep.subr.mxu0 0.0
    %248 = vmatpush1.xpose.msra.mxu0 0.0
    %249 = vmatprep.subr.mxu0 0.0
    %250 = vmatpush1.xpose.msra.mxu0 0.0
    %251 = vmatprep.mubr.f32.mxu0 0.0
    %252 = vmatmul.mubr.f32.gmra.mrb[0].mxu0 %v183
    %v253 = vpop.f32.mrb[0].mxu0
    %v254 = vadd.f32 0.0, %v253
    %v255 = vpop.f32.mrb[0].mxu0
    %256 = vdwg.mxu0
    %vm257 = vcmask 64512
    %v258 = vsel %vm257, %v254, -inf
    %259 = vmax.xlane.f32.xlu0 %v258
    %v260 = vpop.xlane.xlu0 %259
    %v261 = vsub.f32 %v254, %v260
    %v262 = vmul.f32 %v261, 1.442695
    %v263 = vpow.pop %v262
    %v264 = vsel %vm257, %v263, 0.0
    %265 = vadd.xlane.f32.xlu0 %v264
    %v266 = vpop.xlane.xlu0 %265
    %v267 = vrcp.pop %v266
    %v268 = vmul.f32 1.0, %v267
    %v269 = vmul.f32 %v263, %v268
    %271 = vrot.lane.b32.xlu0 %v173, 96
    %v272 = vpop.permute.xlu0 %271
    %v274 = vsel %vm81, %v160, 0
    %v276 = vsel %vm81, %v272, 0
    %278 = vmatprep.subr.mxu0 0.0
    %279 = vmatpush1.xpose.msra.mxu0 %v276
    %280 = vmatprep.subr.mxu0 0.0
    %281 = vmatpush1.xpose.msra.mxu0 0.0
    %282 = vmatprep.subr.mxu0 0.0
    %283 = vmatpush1.xpose.msra.mxu0 0.0
    %284 = vmatprep.subr.mxu0 0.0
    %285 = vmatpush1.xpose.msra.mxu0 0.0
    %286 = vmatprep.subr.mxu0 0.0
    %287 = vmatpush1.xpose.msra.mxu0 0.0
    %288 = vmatprep.subr.mxu0 0.0
    %289 = vmatpush1.xpose.msra.mxu0 0.0
    %290 = vmatprep.subr.mxu0 0.0
    %291 = vmatpush1.xpose.msra.mxu0 0.0
    %292 = vmatprep.subr.mxu0 0.0
    %293 = vmatpush1.xpose.msra.mxu0 0.0
    %294 = vmatprep.subr.mxu0 0.0
    %295 = vmatpush1.xpose.msra.mxu0 0.0
    %296 = vmatprep.subr.mxu0 0.0
    %297 = vmatpush1.xpose.msra.mxu0 0.0
    %298 = vmatprep.subr.mxu0 0.0
    %299 = vmatpush1.xpose.msra.mxu0 0.0
    %300 = vmatprep.subr.mxu0 0.0
    %301 = vmatpush1.xpose.msra.mxu0 0.0
    %302 = vmatprep.subr.mxu0 0.0
    %303 = vmatpush1.xpose.msra.mxu0 0.0
    %304 = vmatprep.subr.mxu0 0.0
    %305 = vmatpush1.xpose.msra.mxu0 0.0
    %306 = vmatprep.subr.mxu0 0.0
    %307 = vmatpush1.xpose.msra.mxu0 0.0
    %308 = vmatprep.subr.mxu0 0.0
    %309 = vmatpush1.xpose.msra.mxu0 0.0
    %310 = vmatprep.subr.mxu0 0.0
    %311 = vmatpush1.xpose.msra.mxu0 0.0
    %312 = vmatprep.subr.mxu0 0.0
    %313 = vmatpush1.xpose.msra.mxu0 0.0
    %314 = vmatprep.subr.mxu0 0.0
    %315 = vmatpush1.xpose.msra.mxu0 0.0
    %316 = vmatprep.subr.mxu0 0.0
    %317 = vmatpush1.xpose.msra.mxu0 0.0
    %318 = vmatprep.subr.mxu0 0.0
    %319 = vmatpush1.xpose.msra.mxu0 0.0
    %320 = vmatprep.subr.mxu0 0.0
    %321 = vmatpush1.xpose.msra.mxu0 0.0
    %322 = vmatprep.subr.mxu0 0.0
    %323 = vmatpush1.xpose.msra.mxu0 0.0
    %324 = vmatprep.subr.mxu0 0.0
    %325 = vmatpush1.xpose.msra.mxu0 0.0
    %326 = vmatprep.subr.mxu0 0.0
    %327 = vmatpush1.xpose.msra.mxu0 0.0
    %328 = vmatprep.subr.mxu0 0.0
    %329 = vmatpush1.xpose.msra.mxu0 0.0
    %330 = vmatprep.subr.mxu0 0.0
    %331 = vmatpush1.xpose.msra.mxu0 0.0
    %332 = vmatprep.subr.mxu0 0.0
    %333 = vmatpush1.xpose.msra.mxu0 0.0
    %334 = vmatprep.subr.mxu0 0.0
    %335 = vmatpush1.xpose.msra.mxu0 0.0
    %336 = vmatprep.subr.mxu0 0.0
    %337 = vmatpush1.xpose.msra.mxu0 0.0
    %338 = vmatprep.subr.mxu0 0.0
    %339 = vmatpush1.xpose.msra.mxu0 0.0
    %340 = vmatprep.subr.mxu0 0.0
    %341 = vmatpush1.xpose.msra.mxu0 0.0
    %342 = vmatprep.mubr.f32.mxu0 0.0
    %343 = vmatmul.mubr.f32.gmra.mrb[0].mxu0 %v274
    %v344 = vpop.f32.mrb[0].mxu0
    %v345 = vadd.f32 0.0, %v344
    %v346 = vpop.f32.mrb[0].mxu0
    %347 = vdwg.mxu0
    %v348 = vsel %vm257, %v345, -inf
    %349 = vmax.xlane.f32.xlu0 %v348
    %v350 = vpop.xlane.xlu0 %349
    %v351 = vsub.f32 %v345, %v350
    %v352 = vmul.f32 %v351, 1.442695
    %v353 = vpow.pop %v352
    %v354 = vsel %vm257, %v353, 0.0
    %355 = vadd.xlane.f32.xlu0 %v354
    %v356 = vpop.xlane.xlu0 %355
    %v357 = vrcp.pop %v356
    %v358 = vmul.f32 1.0, %v357
    %v359 = vmul.f32 %v353, %v358
    %v360 = vlaneseq
    %v361 = vshrl.u32 %v360, 7
    %v362 = vsub.s32 1, %v361
    %v363 = vrot.slane %v163, %v362
    %365 = vrot.lane.b32.xlu0 %v363, 32
    %v366 = vpop.permute.xlu0 %365
    %v368 = vmul.f32 %v155, %v366
    %v369 = vmul.f32 %v160, %v366
    %370 = vrot.lane.b32.xlu0 %v363, 64
    %v371 = vpop.permute.xlu0 %370
    %v373 = vmul.f32 %v155, %v371
    %v374 = vmul.f32 %v160, %v371
    %376 = vrot.lane.b32.xlu0 %v368, 96
    %v377 = vpop.permute.xlu0 %376
    %v378 = vsel %vm81, %v377, 0
    %380 = vmatprep.subr.mxu0 0.0
    %381 = vmatpush1.xpose.msra.mxu0 %v378
    %382 = vmatprep.subr.mxu0 0.0
    %383 = vmatpush1.xpose.msra.mxu0 0.0
    %384 = vmatprep.subr.mxu0 0.0
    %385 = vmatpush1.xpose.msra.mxu0 0.0
    %386 = vmatprep.subr.mxu0 0.0
    %387 = vmatpush1.xpose.msra.mxu0 0.0
    %388 = vmatprep.subr.mxu0 0.0
    %389 = vmatpush1.xpose.msra.mxu0 0.0
    %390 = vmatprep.subr.mxu0 0.0
    %391 = vmatpush1.xpose.msra.mxu0 0.0
    %392 = vmatprep.subr.mxu0 0.0
    %393 = vmatpush1.xpose.msra.mxu0 0.0
    %394 = vmatprep.subr.mxu0 0.0
    %395 = vmatpush1.xpose.msra.mxu0 0.0
    %396 = vmatprep.subr.mxu0 0.0
    %397 = vmatpush1.xpose.msra.mxu0 0.0
    %398 = vmatprep.subr.mxu0 0.0
    %399 = vmatpush1.xpose.msra.mxu0 0.0
    %400 = vmatprep.subr.mxu0 0.0
    %401 = vmatpush1.xpose.msra.mxu0 0.0
    %402 = vmatprep.subr.mxu0 0.0
    %403 = vmatpush1.xpose.msra.mxu0 0.0
    %404 = vmatprep.subr.mxu0 0.0
    %405 = vmatpush1.xpose.msra.mxu0 0.0
    %406 = vmatprep.subr.mxu0 0.0
    %407 = vmatpush1.xpose.msra.mxu0 0.0
    %408 = vmatprep.subr.mxu0 0.0
    %409 = vmatpush1.xpose.msra.mxu0 0.0
    %410 = vmatprep.subr.mxu0 0.0
    %411 = vmatpush1.xpose.msra.mxu0 0.0
    %412 = vmatprep.subr.mxu0 0.0
    %413 = vmatpush1.xpose.msra.mxu0 0.0
    %414 = vmatprep.subr.mxu0 0.0
    %415 = vmatpush1.xpose.msra.mxu0 0.0
    %416 = vmatprep.subr.mxu0 0.0
    %417 = vmatpush1.xpose.msra.mxu0 0.0
    %418 = vmatprep.subr.mxu0 0.0
    %419 = vmatpush1.xpose.msra.mxu0 0.0
    %420 = vmatprep.subr.mxu0 0.0
    %421 = vmatpush1.xpose.msra.mxu0 0.0
    %422 = vmatprep.subr.mxu0 0.0
    %423 = vmatpush1.xpose.msra.mxu0 0.0
    %424 = vmatprep.subr.mxu0 0.0
    %425 = vmatpush1.xpose.msra.mxu0 0.0
    %426 = vmatprep.subr.mxu0 0.0
    %427 = vmatpush1.xpose.msra.mxu0 0.0
    %428 = vmatprep.subr.mxu0 0.0
    %429 = vmatpush1.xpose.msra.mxu0 0.0
    %430 = vmatprep.subr.mxu0 0.0
    %431 = vmatpush1.xpose.msra.mxu0 0.0
    %432 = vmatprep.subr.mxu0 0.0
    %433 = vmatpush1.xpose.msra.mxu0 0.0
    %434 = vmatprep.subr.mxu0 0.0
    %435 = vmatpush1.xpose.msra.mxu0 0.0
    %436 = vmatprep.subr.mxu0 0.0
    %437 = vmatpush1.xpose.msra.mxu0 0.0
    %438 = vmatprep.subr.mxu0 0.0
    %439 = vmatpush1.xpose.msra.mxu0 0.0
    %440 = vmatprep.subr.mxu0 0.0
    %441 = vmatpush1.xpose.msra.mxu0 0.0
    %442 = vmatprep.subr.mxu0 0.0
    %443 = vmatpush1.xpose.msra.mxu0 0.0
    %444 = vmatprep.mubr.f32.mxu0 0.0
    %445 = vmatmul.mubr.f32.gmra.mrb[0].mxu0 %v183
    %v446 = vpop.f32.mrb[0].mxu0
    %v447 = vadd.f32 0.0, %v446
    %v448 = vpop.f32.mrb[0].mxu0
    %449 = vdwg.mxu0
    %v450 = vsel %vm257, %v447, -inf
    %451 = vmax.xlane.f32.xlu0 %v450
    %v452 = vpop.xlane.xlu0 %451
    %v453 = vsub.f32 %v447, %v452
    %v454 = vmul.f32 %v453, 1.442695
    %v455 = vpow.pop %v454
    %v456 = vsel %vm257, %v455, 0.0
    %457 = vadd.xlane.f32.xlu0 %v456
    %v458 = vpop.xlane.xlu0 %457
    %v459 = vrcp.pop %v458
    %v460 = vmul.f32 1.0, %v459
    %v461 = vmul.f32 %v455, %v460
    %463 = vrot.lane.b32.xlu0 %v373, 64
    %v464 = vpop.permute.xlu0 %463
    %v467 = vsel %vm257, %v461, 0
    %469 = vmatprep.subr.mxu0 0.0
    %470 = vmatpush1.msra.mxu0 %v464
    %471 = vmatprep.subr.mxu0 0.0
    %472 = vmatpush1.msra.mxu0 0.0
    %473 = vmatprep.subr.mxu0 0.0
    %474 = vmatpush1.msra.mxu0 0.0
    %475 = vmatprep.subr.mxu0 0.0
    %476 = vmatpush1.msra.mxu0 0.0
    %477 = vmatprep.subr.mxu0 0.0
    %478 = vmatpush1.msra.mxu0 0.0
    %479 = vmatprep.subr.mxu0 0.0
    %480 = vmatpush1.msra.mxu0 0.0
    %481 = vmatprep.subr.mxu0 0.0
    %482 = vmatpush1.msra.mxu0 0.0
    %483 = vmatprep.subr.mxu0 0.0
    %484 = vmatpush1.msra.mxu0 0.0
    %485 = vmatprep.subr.mxu0 0.0
    %486 = vmatpush1.msra.mxu0 0.0
    %487 = vmatprep.subr.mxu0 0.0
    %488 = vmatpush1.msra.mxu0 0.0
    %489 = vmatprep.subr.mxu0 0.0
    %490 = vmatpush1.msra.mxu0 0.0
    %491 = vmatprep.subr.mxu0 0.0
    %492 = vmatpush1.msra.mxu0 0.0
    %493 = vmatprep.subr.mxu0 0.0
    %494 = vmatpush1.msra.mxu0 0.0
    %495 = vmatprep.subr.mxu0 0.0
    %496 = vmatpush1.msra.mxu0 0.0
    %497 = vmatprep.subr.mxu0 0.0
    %498 = vmatpush1.msra.mxu0 0.0
    %499 = vmatprep.subr.mxu0 0.0
    %500 = vmatpush1.msra.mxu0 0.0
    %501 = vmatprep.subr.mxu0 0.0
    %502 = vmatpush1.msra.mxu0 0.0
    %503 = vmatprep.subr.mxu0 0.0
    %504 = vmatpush1.msra.mxu0 0.0
    %505 = vmatprep.subr.mxu0 0.0
    %506 = vmatpush1.msra.mxu0 0.0
    %507 = vmatprep.subr.mxu0 0.0
    %508 = vmatpush1.msra.mxu0 0.0
    %509 = vmatprep.subr.mxu0 0.0
    %510 = vmatpush1.msra.mxu0 0.0
    %511 = vmatprep.subr.mxu0 0.0
    %512 = vmatpush1.msra.mxu0 0.0
    %513 = vmatprep.subr.mxu0 0.0
    %514 = vmatpush1.msra.mxu0 0.0
    %515 = vmatprep.subr.mxu0 0.0
    %516 = vmatpush1.msra.mxu0 0.0
    %517 = vmatprep.subr.mxu0 0.0
    %518 = vmatpush1.msra.mxu0 0.0
    %519 = vmatprep.subr.mxu0 0.0
    %520 = vmatpush1.msra.mxu0 0.0
    %521 = vmatprep.subr.mxu0 0.0
    %522 = vmatpush1.msra.mxu0 0.0
    %523 = vmatprep.subr.mxu0 0.0
    %524 = vmatpush1.msra.mxu0 0.0
    %525 = vmatprep.subr.mxu0 0.0
    %526 = vmatpush1.msra.mxu0 0.0
    %527 = vmatprep.subr.mxu0 0.0
    %528 = vmatpush1.msra.mxu0 0.0
    %529 = vmatprep.subr.mxu0 0.0
    %530 = vmatpush1.msra.mxu0 0.0
    %531 = vmatprep.subr.mxu0 0.0
    %532 = vmatpush1.msra.mxu0 0.0
    %533 = vmatprep.mubr.f32.mxu0 0.0
    %534 = vmatmul.mubr.f32.gmra.mrb[0].mxu0 %v467
    %v535 = vpop.f32.mrb[0].mxu0
    %v536 = vadd.f32 0.0, %v535
    %v537 = vpop.f32.mrb[0].mxu0
    %538 = vdwg.mxu0
    %540 = vrot.lane.b32.xlu0 %v177, 64
    %v541 = vpop.permute.xlu0 %540
    %v544 = vsel %vm257, %v269, 0
    %546 = vmatprep.subr.mxu0 0.0
    %547 = vmatpush1.msra.mxu0 %v541
    %548 = vmatprep.subr.mxu0 0.0
    %549 = vmatpush1.msra.mxu0 0.0
    %550 = vmatprep.subr.mxu0 0.0
    %551 = vmatpush1.msra.mxu0 0.0
    %552 = vmatprep.subr.mxu0 0.0
    %553 = vmatpush1.msra.mxu0 0.0
    %554 = vmatprep.subr.mxu0 0.0
    %555 = vmatpush1.msra.mxu0 0.0
    %556 = vmatprep.subr.mxu0 0.0
    %557 = vmatpush1.msra.mxu0 0.0
    %558 = vmatprep.subr.mxu0 0.0
    %559 = vmatpush1.msra.mxu0 0.0
    %560 = vmatprep.subr.mxu0 0.0
    %561 = vmatpush1.msra.mxu0 0.0
    %562 = vmatprep.subr.mxu0 0.0
    %563 = vmatpush1.msra.mxu0 0.0
    %564 = vmatprep.subr.mxu0 0.0
    %565 = vmatpush1.msra.mxu0 0.0
    %566 = vmatprep.subr.mxu0 0.0
    %567 = vmatpush1.msra.mxu0 0.0
    %568 = vmatprep.subr.mxu0 0.0
    %569 = vmatpush1.msra.mxu0 0.0
    %570 = vmatprep.subr.mxu0 0.0
    %571 = vmatpush1.msra.mxu0 0.0
    %572 = vmatprep.subr.mxu0 0.0
    %573 = vmatpush1.msra.mxu0 0.0
    %574 = vmatprep.subr.mxu0 0.0
    %575 = vmatpush1.msra.mxu0 0.0
    %576 = vmatprep.subr.mxu0 0.0
    %577 = vmatpush1.msra.mxu0 0.0
    %578 = vmatprep.subr.mxu0 0.0
    %579 = vmatpush1.msra.mxu0 0.0
    %580 = vmatprep.subr.mxu0 0.0
    %581 = vmatpush1.msra.mxu0 0.0
    %582 = vmatprep.subr.mxu0 0.0
    %583 = vmatpush1.msra.mxu0 0.0
    %584 = vmatprep.subr.mxu0 0.0
    %585 = vmatpush1.msra.mxu0 0.0
    %586 = vmatprep.subr.mxu0 0.0
    %587 = vmatpush1.msra.mxu0 0.0
    %588 = vmatprep.subr.mxu0 0.0
    %589 = vmatpush1.msra.mxu0 0.0
    %590 = vmatprep.subr.mxu0 0.0
    %591 = vmatpush1.msra.mxu0 0.0
    %592 = vmatprep.subr.mxu0 0.0
    %593 = vmatpush1.msra.mxu0 0.0
    %594 = vmatprep.subr.mxu0 0.0
    %595 = vmatpush1.msra.mxu0 0.0
    %596 = vmatprep.subr.mxu0 0.0
    %597 = vmatpush1.msra.mxu0 0.0
    %598 = vmatprep.subr.mxu0 0.0
    %599 = vmatpush1.msra.mxu0 0.0
    %600 = vmatprep.subr.mxu0 0.0
    %601 = vmatpush1.msra.mxu0 0.0
    %602 = vmatprep.subr.mxu0 0.0
    %603 = vmatpush1.msra.mxu0 0.0
    %604 = vmatprep.subr.mxu0 0.0
    %605 = vmatpush1.msra.mxu0 0.0
    %606 = vmatprep.subr.mxu0 0.0
    %607 = vmatpush1.msra.mxu0 0.0
    %608 = vmatprep.subr.mxu0 0.0
    %609 = vmatpush1.msra.mxu0 0.0
    %610 = vmatprep.mubr.f32.mxu0 0.0
    %611 = vmatmul.mubr.f32.gmra.mrb[0].mxu0 %v544
    %v612 = vpop.f32.mrb[0].mxu0
    %v613 = vadd.f32 %v536, %v612
    %v614 = vpop.f32.mrb[0].mxu0
    %615 = vdwg.mxu0
    %617 = vrot.lane.b32.xlu0 %v369, 96
    %v618 = vpop.permute.xlu0 %617
    %v619 = vsel %vm81, %v618, 0
    %621 = vmatprep.subr.mxu0 0.0
    %622 = vmatpush1.xpose.msra.mxu0 %v619
    %623 = vmatprep.subr.mxu0 0.0
    %624 = vmatpush1.xpose.msra.mxu0 0.0
    %625 = vmatprep.subr.mxu0 0.0
    %626 = vmatpush1.xpose.msra.mxu0 0.0
    %627 = vmatprep.subr.mxu0 0.0
    %628 = vmatpush1.xpose.msra.mxu0 0.0
    %629 = vmatprep.subr.mxu0 0.0
    %630 = vmatpush1.xpose.msra.mxu0 0.0
    %631 = vmatprep.subr.mxu0 0.0
    %632 = vmatpush1.xpose.msra.mxu0 0.0
    %633 = vmatprep.subr.mxu0 0.0
    %634 = vmatpush1.xpose.msra.mxu0 0.0
    %635 = vmatprep.subr.mxu0 0.0
    %636 = vmatpush1.xpose.msra.mxu0 0.0
    %637 = vmatprep.subr.mxu0 0.0
    %638 = vmatpush1.xpose.msra.mxu0 0.0
    %639 = vmatprep.subr.mxu0 0.0
    %640 = vmatpush1.xpose.msra.mxu0 0.0
    %641 = vmatprep.subr.mxu0 0.0
    %642 = vmatpush1.xpose.msra.mxu0 0.0
    %643 = vmatprep.subr.mxu0 0.0
    %644 = vmatpush1.xpose.msra.mxu0 0.0
    %645 = vmatprep.subr.mxu0 0.0
    %646 = vmatpush1.xpose.msra.mxu0 0.0
    %647 = vmatprep.subr.mxu0 0.0
    %648 = vmatpush1.xpose.msra.mxu0 0.0
    %649 = vmatprep.subr.mxu0 0.0
    %650 = vmatpush1.xpose.msra.mxu0 0.0
    %651 = vmatprep.subr.mxu0 0.0
    %652 = vmatpush1.xpose.msra.mxu0 0.0
    %653 = vmatprep.subr.mxu0 0.0
    %654 = vmatpush1.xpose.msra.mxu0 0.0
    %655 = vmatprep.subr.mxu0 0.0
    %656 = vmatpush1.xpose.msra.mxu0 0.0
    %657 = vmatprep.subr.mxu0 0.0
    %658 = vmatpush1.xpose.msra.mxu0 0.0
    %659 = vmatprep.subr.mxu0 0.0
    %660 = vmatpush1.xpose.msra.mxu0 0.0
    %661 = vmatprep.subr.mxu0 0.0
    %662 = vmatpush1.xpose.msra.mxu0 0.0
    %663 = vmatprep.subr.mxu0 0.0
    %664 = vmatpush1.xpose.msra.mxu0 0.0
    %665 = vmatprep.subr.mxu0 0.0
    %666 = vmatpush1.xpose.msra.mxu0 0.0
    %667 = vmatprep.subr.mxu0 0.0
    %668 = vmatpush1.xpose.msra.mxu0 0.0
    %669 = vmatprep.subr.mxu0 0.0
    %670 = vmatpush1.xpose.msra.mxu0 0.0
    %671 = vmatprep.subr.mxu0 0.0
    %672 = vmatpush1.xpose.msra.mxu0 0.0
    %673 = vmatprep.subr.mxu0 0.0
    %674 = vmatpush1.xpose.msra.mxu0 0.0
    %675 = vmatprep.subr.mxu0 0.0
    %676 = vmatpush1.xpose.msra.mxu0 0.0
    %677 = vmatprep.subr.mxu0 0.0
    %678 = vmatpush1.xpose.msra.mxu0 0.0
    %679 = vmatprep.subr.mxu0 0.0
    %680 = vmatpush1.xpose.msra.mxu0 0.0
    %681 = vmatprep.subr.mxu0 0.0
    %682 = vmatpush1.xpose.msra.mxu0 0.0
    %683 = vmatprep.subr.mxu0 0.0
    %684 = vmatpush1.xpose.msra.mxu0 0.0
    %685 = vmatprep.mubr.f32.mxu0 0.0
    %686 = vmatmul.mubr.f32.gmra.mrb[0].mxu0 %v274
    %v687 = vpop.f32.mrb[0].mxu0
    %v688 = vadd.f32 0.0, %v687
    %v689 = vpop.f32.mrb[0].mxu0
    %690 = vdwg.mxu0
    %v691 = vsel %vm257, %v688, -inf
    %692 = vmax.xlane.f32.xlu0 %v691
    %v693 = vpop.xlane.xlu0 %692
    %v694 = vsub.f32 %v688, %v693
    %v695 = vmul.f32 %v694, 1.442695
    %v696 = vpow.pop %v695
    %v697 = vsel %vm257, %v696, 0.0
    %698 = vadd.xlane.f32.xlu0 %v697
    %v699 = vpop.xlane.xlu0 %698
    %v700 = vrcp.pop %v699
    %v701 = vmul.f32 1.0, %v700
    %v702 = vmul.f32 %v696, %v701
    %704 = vrot.lane.b32.xlu0 %v374, 64
    %v705 = vpop.permute.xlu0 %704
    %v708 = vsel %vm257, %v702, 0
    %710 = vmatprep.subr.mxu0 0.0
    %711 = vmatpush1.msra.mxu0 %v705
    %712 = vmatprep.subr.mxu0 0.0
    %713 = vmatpush1.msra.mxu0 0.0
    %714 = vmatprep.subr.mxu0 0.0
    %715 = vmatpush1.msra.mxu0 0.0
    %716 = vmatprep.subr.mxu0 0.0
    %717 = vmatpush1.msra.mxu0 0.0
    %718 = vmatprep.subr.mxu0 0.0
    %719 = vmatpush1.msra.mxu0 0.0
    %720 = vmatprep.subr.mxu0 0.0
    %721 = vmatpush1.msra.mxu0 0.0
    %722 = vmatprep.subr.mxu0 0.0
    %723 = vmatpush1.msra.mxu0 0.0
    %724 = vmatprep.subr.mxu0 0.0
    %725 = vmatpush1.msra.mxu0 0.0
    %726 = vmatprep.subr.mxu0 0.0
    %727 = vmatpush1.msra.mxu0 0.0
    %728 = vmatprep.subr.mxu0 0.0
    %729 = vmatpush1.msra.mxu0 0.0
    %730 = vmatprep.subr.mxu0 0.0
    %731 = vmatpush1.msra.mxu0 0.0
    %732 = vmatprep.subr.mxu0 0.0
    %733 = vmatpush1.msra.mxu0 0.0
    %734 = vmatprep.subr.mxu0 0.0
    %735 = vmatpush1.msra.mxu0 0.0
    %736 = vmatprep.subr.mxu0 0.0
    %737 = vmatpush1.msra.mxu0 0.0
    %738 = vmatprep.subr.mxu0 0.0
    %739 = vmatpush1.msra.mxu0 0.0
    %740 = vmatprep.subr.mxu0 0.0
    %741 = vmatpush1.msra.mxu0 0.0
    %742 = vmatprep.subr.mxu0 0.0
    %743 = vmatpush1.msra.mxu0 0.0
    %744 = vmatprep.subr.mxu0 0.0
    %745 = vmatpush1.msra.mxu0 0.0
    %746 = vmatprep.subr.mxu0 0.0
    %747 = vmatpush1.msra.mxu0 0.0
    %748 = vmatprep.subr.mxu0 0.0
    %749 = vmatpush1.msra.mxu0 0.0
    %750 = vmatprep.subr.mxu0 0.0
    %751 = vmatpush1.msra.mxu0 0.0
    %752 = vmatprep.subr.mxu0 0.0
    %753 = vmatpush1.msra.mxu0 0.0
    %754 = vmatprep.subr.mxu0 0.0
    %755 = vmatpush1.msra.mxu0 0.0
    %756 = vmatprep.subr.mxu0 0.0
    %757 = vmatpush1.msra.mxu0 0.0
    %758 = vmatprep.subr.mxu0 0.0
    %759 = vmatpush1.msra.mxu0 0.0
    %760 = vmatprep.subr.mxu0 0.0
    %761 = vmatpush1.msra.mxu0 0.0
    %762 = vmatprep.subr.mxu0 0.0
    %763 = vmatpush1.msra.mxu0 0.0
    %764 = vmatprep.subr.mxu0 0.0
    %765 = vmatpush1.msra.mxu0 0.0
    %766 = vmatprep.subr.mxu0 0.0
    %767 = vmatpush1.msra.mxu0 0.0
    %768 = vmatprep.subr.mxu0 0.0
    %769 = vmatpush1.msra.mxu0 0.0
    %770 = vmatprep.subr.mxu0 0.0
    %771 = vmatpush1.msra.mxu0 0.0
    %772 = vmatprep.subr.mxu0 0.0
    %773 = vmatpush1.msra.mxu0 0.0
    %774 = vmatprep.mubr.f32.mxu0 0.0
    %775 = vmatmul.mubr.f32.gmra.mrb[0].mxu0 %v708
    %v776 = vpop.f32.mrb[0].mxu0
    %v777 = vadd.f32 0.0, %v776
    %v778 = vpop.f32.mrb[0].mxu0
    %779 = vdwg.mxu0
    %781 = vrot.lane.b32.xlu0 %v178, 64
    %v782 = vpop.permute.xlu0 %781
    %v785 = vsel %vm257, %v359, 0
    %787 = vmatprep.subr.mxu0 0.0
    %788 = vmatpush1.msra.mxu0 %v782
    %789 = vmatprep.subr.mxu0 0.0
    %790 = vmatpush1.msra.mxu0 0.0
    %791 = vmatprep.subr.mxu0 0.0
    %792 = vmatpush1.msra.mxu0 0.0
    %793 = vmatprep.subr.mxu0 0.0
    %794 = vmatpush1.msra.mxu0 0.0
    %795 = vmatprep.subr.mxu0 0.0
    %796 = vmatpush1.msra.mxu0 0.0
    %797 = vmatprep.subr.mxu0 0.0
    %798 = vmatpush1.msra.mxu0 0.0
    %799 = vmatprep.subr.mxu0 0.0
    %800 = vmatpush1.msra.mxu0 0.0
    %801 = vmatprep.subr.mxu0 0.0
    %802 = vmatpush1.msra.mxu0 0.0
    %803 = vmatprep.subr.mxu0 0.0
    %804 = vmatpush1.msra.mxu0 0.0
    %805 = vmatprep.subr.mxu0 0.0
    %806 = vmatpush1.msra.mxu0 0.0
    %807 = vmatprep.subr.mxu0 0.0
    %808 = vmatpush1.msra.mxu0 0.0
    %809 = vmatprep.subr.mxu0 0.0
    %810 = vmatpush1.msra.mxu0 0.0
    %811 = vmatprep.subr.mxu0 0.0
    %812 = vmatpush1.msra.mxu0 0.0
    %813 = vmatprep.subr.mxu0 0.0
    %814 = vmatpush1.msra.mxu0 0.0
    %815 = vmatprep.subr.mxu0 0.0
    %816 = vmatpush1.msra.mxu0 0.0
    %817 = vmatprep.subr.mxu0 0.0
    %818 = vmatpush1.msra.mxu0 0.0
    %819 = vmatprep.subr.mxu0 0.0
    %820 = vmatpush1.msra.mxu0 0.0
    %821 = vmatprep.subr.mxu0 0.0
    %822 = vmatpush1.msra.mxu0 0.0
    %823 = vmatprep.subr.mxu0 0.0
    %824 = vmatpush1.msra.mxu0 0.0
    %825 = vmatprep.subr.mxu0 0.0
    %826 = vmatpush1.msra.mxu0 0.0
    %827 = vmatprep.subr.mxu0 0.0
    %828 = vmatpush1.msra.mxu0 0.0
    %829 = vmatprep.subr.mxu0 0.0
    %830 = vmatpush1.msra.mxu0 0.0
    %831 = vmatprep.subr.mxu0 0.0
    %832 = vmatpush1.msra.mxu0 0.0
    %833 = vmatprep.subr.mxu0 0.0
    %834 = vmatpush1.msra.mxu0 0.0
    %835 = vmatprep.subr.mxu0 0.0
    %836 = vmatpush1.msra.mxu0 0.0
    %837 = vmatprep.subr.mxu0 0.0
    %838 = vmatpush1.msra.mxu0 0.0
    %839 = vmatprep.subr.mxu0 0.0
    %840 = vmatpush1.msra.mxu0 0.0
    %841 = vmatprep.subr.mxu0 0.0
    %842 = vmatpush1.msra.mxu0 0.0
    %843 = vmatprep.subr.mxu0 0.0
    %844 = vmatpush1.msra.mxu0 0.0
    %845 = vmatprep.subr.mxu0 0.0
    %846 = vmatpush1.msra.mxu0 0.0
    %847 = vmatprep.subr.mxu0 0.0
    %848 = vmatpush1.msra.mxu0 0.0
    %849 = vmatprep.subr.mxu0 0.0
    %850 = vmatpush1.msra.mxu0 0.0
    %851 = vmatprep.mubr.f32.mxu0 0.0
    %852 = vmatmul.mubr.f32.gmra.mrb[0].mxu0 %v785
    %v853 = vpop.f32.mrb[0].mxu0
    %v854 = vadd.f32 %v777, %v853
    %v855 = vpop.f32.mrb[0].mxu0
    %856 = vdwg.mxu0
    %v857 = vlaneseq
    %v858 = vshrl.u32 %v857, 7
    %v859 = vsub.s32 2, %v858
    %v860 = vrot.slane %v163, %v859
    %862 = vrot.lane.b32.xlu0 %v860, 32
    %v863 = vpop.permute.xlu0 %862
    %v865 = vmul.f32 %v155, %v863
    %v866 = vmul.f32 %v160, %v863
    %867 = vrot.lane.b32.xlu0 %v860, 64
    %v868 = vpop.permute.xlu0 %867
    %v870 = vmul.f32 %v155, %v868
    %v871 = vmul.f32 %v160, %v868
    %873 = vrot.lane.b32.xlu0 %v865, 96
    %v874 = vpop.permute.xlu0 %873
    %v875 = vsel %vm81, %v874, 0
    %877 = vmatprep.subr.mxu0 0.0
    %878 = vmatpush1.xpose.msra.mxu0 %v875
    %879 = vmatprep.subr.mxu0 0.0
    %880 = vmatpush1.xpose.msra.mxu0 0.0
    %881 = vmatprep.subr.mxu0 0.0
    %882 = vmatpush1.xpose.msra.mxu0 0.0
    %883 = vmatprep.subr.mxu0 0.0
    %884 = vmatpush1.xpose.msra.mxu0 0.0
    %885 = vmatprep.subr.mxu0 0.0
    %886 = vmatpush1.xpose.msra.mxu0 0.0
    %887 = vmatprep.subr.mxu0 0.0
    %888 = vmatpush1.xpose.msra.mxu0 0.0
    %889 = vmatprep.subr.mxu0 0.0
    %890 = vmatpush1.xpose.msra.mxu0 0.0
    %891 = vmatprep.subr.mxu0 0.0
    %892 = vmatpush1.xpose.msra.mxu0 0.0
    %893 = vmatprep.subr.mxu0 0.0
    %894 = vmatpush1.xpose.msra.mxu0 0.0
    %895 = vmatprep.subr.mxu0 0.0
    %896 = vmatpush1.xpose.msra.mxu0 0.0
    %897 = vmatprep.subr.mxu0 0.0
    %898 = vmatpush1.xpose.msra.mxu0 0.0
    %899 = vmatprep.subr.mxu0 0.0
    %900 = vmatpush1.xpose.msra.mxu0 0.0
    %901 = vmatprep.subr.mxu0 0.0
    %902 = vmatpush1.xpose.msra.mxu0 0.0
    %903 = vmatprep.subr.mxu0 0.0
    %904 = vmatpush1.xpose.msra.mxu0 0.0
    %905 = vmatprep.subr.mxu0 0.0
    %906 = vmatpush1.xpose.msra.mxu0 0.0
    %907 = vmatprep.subr.mxu0 0.0
    %908 = vmatpush1.xpose.msra.mxu0 0.0
    %909 = vmatprep.subr.mxu0 0.0
    %910 = vmatpush1.xpose.msra.mxu0 0.0
    %911 = vmatprep.subr.mxu0 0.0
    %912 = vmatpush1.xpose.msra.mxu0 0.0
    %913 = vmatprep.subr.mxu0 0.0
    %914 = vmatpush1.xpose.msra.mxu0 0.0
    %915 = vmatprep.subr.mxu0 0.0
    %916 = vmatpush1.xpose.msra.mxu0 0.0
    %917 = vmatprep.subr.mxu0 0.0
    %918 = vmatpush1.xpose.msra.mxu0 0.0
    %919 = vmatprep.subr.mxu0 0.0
    %920 = vmatpush1.xpose.msra.mxu0 0.0
    %921 = vmatprep.subr.mxu0 0.0
    %922 = vmatpush1.xpose.msra.mxu0 0.0
    %923 = vmatprep.subr.mxu0 0.0
    %924 = vmatpush1.xpose.msra.mxu0 0.0
    %925 = vmatprep.subr.mxu0 0.0
    %926 = vmatpush1.xpose.msra.mxu0 0.0
    %927 = vmatprep.subr.mxu0 0.0
    %928 = vmatpush1.xpose.msra.mxu0 0.0
    %929 = vmatprep.subr.mxu0 0.0
    %930 = vmatpush1.xpose.msra.mxu0 0.0
    %931 = vmatprep.subr.mxu0 0.0
    %932 = vmatpush1.xpose.msra.mxu0 0.0
    %933 = vmatprep.subr.mxu0 0.0
    %934 = vmatpush1.xpose.msra.mxu0 0.0
    %935 = vmatprep.subr.mxu0 0.0
    %936 = vmatpush1.xpose.msra.mxu0 0.0
    %937 = vmatprep.subr.mxu0 0.0
    %938 = vmatpush1.xpose.msra.mxu0 0.0
    %939 = vmatprep.subr.mxu0 0.0
    %940 = vmatpush1.xpose.msra.mxu0 0.0
    %941 = vmatprep.mubr.f32.mxu0 0.0
    %942 = vmatmul.mubr.f32.gmra.mrb[0].mxu0 %v183
    %v943 = vpop.f32.mrb[0].mxu0
    %v944 = vadd.f32 0.0, %v943
    %v945 = vpop.f32.mrb[0].mxu0
    %946 = vdwg.mxu0
    %v947 = vsel %vm257, %v944, -inf
    %948 = vmax.xlane.f32.xlu0 %v947
    %v949 = vpop.xlane.xlu0 %948
    %v950 = vsub.f32 %v944, %v949
    %v951 = vmul.f32 %v950, 1.442695
    %v952 = vpow.pop %v951
    %v953 = vsel %vm257, %v952, 0.0
    %954 = vadd.xlane.f32.xlu0 %v953
    %v955 = vpop.xlane.xlu0 %954
    %v956 = vrcp.pop %v955
    %v957 = vmul.f32 1.0, %v956
    %v958 = vmul.f32 %v952, %v957
    %960 = vrot.lane.b32.xlu0 %v870, 64
    %v961 = vpop.permute.xlu0 %960
    %v964 = vsel %vm257, %v958, 0
    %966 = vmatprep.subr.mxu0 0.0
    %967 = vmatpush1.msra.mxu0 %v961
    %968 = vmatprep.subr.mxu0 0.0
    %969 = vmatpush1.msra.mxu0 0.0
    %970 = vmatprep.subr.mxu0 0.0
    %971 = vmatpush1.msra.mxu0 0.0
    %972 = vmatprep.subr.mxu0 0.0
    %973 = vmatpush1.msra.mxu0 0.0
    %974 = vmatprep.subr.mxu0 0.0
    %975 = vmatpush1.msra.mxu0 0.0
    %976 = vmatprep.subr.mxu0 0.0
    %977 = vmatpush1.msra.mxu0 0.0
    %978 = vmatprep.subr.mxu0 0.0
    %979 = vmatpush1.msra.mxu0 0.0
    %980 = vmatprep.subr.mxu0 0.0
    %981 = vmatpush1.msra.mxu0 0.0
    %982 = vmatprep.subr.mxu0 0.0
    %983 = vmatpush1.msra.mxu0 0.0
    %984 = vmatprep.subr.mxu0 0.0
    %985 = vmatpush1.msra.mxu0 0.0
    %986 = vmatprep.subr.mxu0 0.0
    %987 = vmatpush1.msra.mxu0 0.0
    %988 = vmatprep.subr.mxu0 0.0
    %989 = vmatpush1.msra.mxu0 0.0
    %990 = vmatprep.subr.mxu0 0.0
    %991 = vmatpush1.msra.mxu0 0.0
    %992 = vmatprep.subr.mxu0 0.0
    %993 = vmatpush1.msra.mxu0 0.0
    %994 = vmatprep.subr.mxu0 0.0
    %995 = vmatpush1.msra.mxu0 0.0
    %996 = vmatprep.subr.mxu0 0.0
    %997 = vmatpush1.msra.mxu0 0.0
    %998 = vmatprep.subr.mxu0 0.0
    %999 = vmatpush1.msra.mxu0 0.0
    %1000 = vmatprep.subr.mxu0 0.0
    %1001 = vmatpush1.msra.mxu0 0.0
    %1002 = vmatprep.subr.mxu0 0.0
    %1003 = vmatpush1.msra.mxu0 0.0
    %1004 = vmatprep.subr.mxu0 0.0
    %1005 = vmatpush1.msra.mxu0 0.0
    %1006 = vmatprep.subr.mxu0 0.0
    %1007 = vmatpush1.msra.mxu0 0.0
    %1008 = vmatprep.subr.mxu0 0.0
    %1009 = vmatpush1.msra.mxu0 0.0
    %1010 = vmatprep.subr.mxu0 0.0
    %1011 = vmatpush1.msra.mxu0 0.0
    %1012 = vmatprep.subr.mxu0 0.0
    %1013 = vmatpush1.msra.mxu0 0.0
    %1014 = vmatprep.subr.mxu0 0.0
    %1015 = vmatpush1.msra.mxu0 0.0
    %1016 = vmatprep.subr.mxu0 0.0
    %1017 = vmatpush1.msra.mxu0 0.0
    %1018 = vmatprep.subr.mxu0 0.0
    %1019 = vmatpush1.msra.mxu0 0.0
    %1020 = vmatprep.subr.mxu0 0.0
    %1021 = vmatpush1.msra.mxu0 0.0
    %1022 = vmatprep.subr.mxu0 0.0
    %1023 = vmatpush1.msra.mxu0 0.0
    %1024 = vmatprep.subr.mxu0 0.0
    %1025 = vmatpush1.msra.mxu0 0.0
    %1026 = vmatprep.subr.mxu0 0.0
    %1027 = vmatpush1.msra.mxu0 0.0
    %1028 = vmatprep.subr.mxu0 0.0
    %1029 = vmatpush1.msra.mxu0 0.0
    %1030 = vmatprep.mubr.f32.mxu0 0.0
    %1031 = vmatmul.mubr.f32.gmra.mrb[0].mxu0 %v964
    %v1032 = vpop.f32.mrb[0].mxu0
    %v1033 = vadd.f32 0.0, %v1032
    %v1034 = vpop.f32.mrb[0].mxu0
    %1035 = vdwg.mxu0
    %v1036 = vadd.f32 %v613, %v1033
    %1038 = vrot.lane.b32.xlu0 %v866, 96
    %v1039 = vpop.permute.xlu0 %1038
    %v1040 = vsel %vm81, %v1039, 0
    %1042 = vmatprep.subr.mxu0 0.0
    %1043 = vmatpush1.xpose.msra.mxu0 %v1040
    %1044 = vmatprep.subr.mxu0 0.0
    %1045 = vmatpush1.xpose.msra.mxu0 0.0
    %1046 = vmatprep.subr.mxu0 0.0
    %1047 = vmatpush1.xpose.msra.mxu0 0.0
    %1048 = vmatprep.subr.mxu0 0.0
    %1049 = vmatpush1.xpose.msra.mxu0 0.0
    %1050 = vmatprep.subr.mxu0 0.0
    %1051 = vmatpush1.xpose.msra.mxu0 0.0
    %1052 = vmatprep.subr.mxu0 0.0
    %1053 = vmatpush1.xpose.msra.mxu0 0.0
    %1054 = vmatprep.subr.mxu0 0.0
    %1055 = vmatpush1.xpose.msra.mxu0 0.0
    %1056 = vmatprep.subr.mxu0 0.0
    %1057 = vmatpush1.xpose.msra.mxu0 0.0
    %1058 = vmatprep.subr.mxu0 0.0
    %1059 = vmatpush1.xpose.msra.mxu0 0.0
    %1060 = vmatprep.subr.mxu0 0.0
    %1061 = vmatpush1.xpose.msra.mxu0 0.0
    %1062 = vmatprep.subr.mxu0 0.0
    %1063 = vmatpush1.xpose.msra.mxu0 0.0
    %1064 = vmatprep.subr.mxu0 0.0
    %1065 = vmatpush1.xpose.msra.mxu0 0.0
    %1066 = vmatprep.subr.mxu0 0.0
    %1067 = vmatpush1.xpose.msra.mxu0 0.0
    %1068 = vmatprep.subr.mxu0 0.0
    %1069 = vmatpush1.xpose.msra.mxu0 0.0
    %1070 = vmatprep.subr.mxu0 0.0
    %1071 = vmatpush1.xpose.msra.mxu0 0.0
    %1072 = vmatprep.subr.mxu0 0.0
    %1073 = vmatpush1.xpose.msra.mxu0 0.0
    %1074 = vmatprep.subr.mxu0 0.0
    %1075 = vmatpush1.xpose.msra.mxu0 0.0
    %1076 = vmatprep.subr.mxu0 0.0
    %1077 = vmatpush1.xpose.msra.mxu0 0.0
    %1078 = vmatprep.subr.mxu0 0.0
    %1079 = vmatpush1.xpose.msra.mxu0 0.0
    %1080 = vmatprep.subr.mxu0 0.0
    %1081 = vmatpush1.xpose.msra.mxu0 0.0
    %1082 = vmatprep.subr.mxu0 0.0
    %1083 = vmatpush1.xpose.msra.mxu0 0.0
    %1084 = vmatprep.subr.mxu0 0.0
    %1085 = vmatpush1.xpose.msra.mxu0 0.0
    %1086 = vmatprep.subr.mxu0 0.0
    %1087 = vmatpush1.xpose.msra.mxu0 0.0
    %1088 = vmatprep.subr.mxu0 0.0
    %1089 = vmatpush1.xpose.msra.mxu0 0.0
    %1090 = vmatprep.subr.mxu0 0.0
    %1091 = vmatpush1.xpose.msra.mxu0 0.0
    %1092 = vmatprep.subr.mxu0 0.0
    %1093 = vmatpush1.xpose.msra.mxu0 0.0
    %1094 = vmatprep.subr.mxu0 0.0
    %1095 = vmatpush1.xpose.msra.mxu0 0.0
    %1096 = vmatprep.subr.mxu0 0.0
    %1097 = vmatpush1.xpose.msra.mxu0 0.0
    %1098 = vmatprep.subr.mxu0 0.0
    %1099 = vmatpush1.xpose.msra.mxu0 0.0
    %1100 = vmatprep.subr.mxu0 0.0
    %1101 = vmatpush1.xpose.msra.mxu0 0.0
    %1102 = vmatprep.subr.mxu0 0.0
    %1103 = vmatpush1.xpose.msra.mxu0 0.0
    %1104 = vmatprep.subr.mxu0 0.0
    %1105 = vmatpush1.xpose.msra.mxu0 0.0
    %1106 = vmatprep.mubr.f32.mxu0 0.0
    %1107 = vmatmul.mubr.f32.gmra.mrb[0].mxu0 %v274
    %v1108 = vpop.f32.mrb[0].mxu0
    %v1109 = vadd.f32 0.0, %v1108
    %v1110 = vpop.f32.mrb[0].mxu0
    %1111 = vdwg.mxu0
    %v1112 = vsel %vm257, %v1109, -inf
    %1113 = vmax.xlane.f32.xlu0 %v1112
    %v1114 = vpop.xlane.xlu0 %1113
    %v1115 = vsub.f32 %v1109, %v1114
    %v1116 = vmul.f32 %v1115, 1.442695
    %v1117 = vpow.pop %v1116
    %v1118 = vsel %vm257, %v1117, 0.0
    %1119 = vadd.xlane.f32.xlu0 %v1118
    %v1120 = vpop.xlane.xlu0 %1119
    %v1121 = vrcp.pop %v1120
    %v1122 = vmul.f32 1.0, %v1121
    %v1123 = vmul.f32 %v1117, %v1122
    %1125 = vrot.lane.b32.xlu0 %v871, 64
    %v1126 = vpop.permute.xlu0 %1125
    %v1129 = vsel %vm257, %v1123, 0
    %1131 = vmatprep.subr.mxu0 0.0
    %1132 = vmatpush1.msra.mxu0 %v1126
    %1133 = vmatprep.subr.mxu0 0.0
    %1134 = vmatpush1.msra.mxu0 0.0
    %1135 = vmatprep.subr.mxu0 0.0
    %1136 = vmatpush1.msra.mxu0 0.0
    %1137 = vmatprep.subr.mxu0 0.0
    %1138 = vmatpush1.msra.mxu0 0.0
    %1139 = vmatprep.subr.mxu0 0.0
    %1140 = vmatpush1.msra.mxu0 0.0
    %1141 = vmatprep.subr.mxu0 0.0
    %1142 = vmatpush1.msra.mxu0 0.0
    %1143 = vmatprep.subr.mxu0 0.0
    %1144 = vmatpush1.msra.mxu0 0.0
    %1145 = vmatprep.subr.mxu0 0.0
    %1146 = vmatpush1.msra.mxu0 0.0
    %1147 = vmatprep.subr.mxu0 0.0
    %1148 = vmatpush1.msra.mxu0 0.0
    %1149 = vmatprep.subr.mxu0 0.0
    %1150 = vmatpush1.msra.mxu0 0.0
    %1151 = vmatprep.subr.mxu0 0.0
    %1152 = vmatpush1.msra.mxu0 0.0
    %1153 = vmatprep.subr.mxu0 0.0
    %1154 = vmatpush1.msra.mxu0 0.0
    %1155 = vmatprep.subr.mxu0 0.0
    %1156 = vmatpush1.msra.mxu0 0.0
    %1157 = vmatprep.subr.mxu0 0.0
    %1158 = vmatpush1.msra.mxu0 0.0
    %1159 = vmatprep.subr.mxu0 0.0
    %1160 = vmatpush1.msra.mxu0 0.0
    %1161 = vmatprep.subr.mxu0 0.0
    %1162 = vmatpush1.msra.mxu0 0.0
    %1163 = vmatprep.subr.mxu0 0.0
    %1164 = vmatpush1.msra.mxu0 0.0
    %1165 = vmatprep.subr.mxu0 0.0
    %1166 = vmatpush1.msra.mxu0 0.0
    %1167 = vmatprep.subr.mxu0 0.0
    %1168 = vmatpush1.msra.mxu0 0.0
    %1169 = vmatprep.subr.mxu0 0.0
    %1170 = vmatpush1.msra.mxu0 0.0
    %1171 = vmatprep.subr.mxu0 0.0
    %1172 = vmatpush1.msra.mxu0 0.0
    %1173 = vmatprep.subr.mxu0 0.0
    %1174 = vmatpush1.msra.mxu0 0.0
    %1175 = vmatprep.subr.mxu0 0.0
    %1176 = vmatpush1.msra.mxu0 0.0
    %1177 = vmatprep.subr.mxu0 0.0
    %1178 = vmatpush1.msra.mxu0 0.0
    %1179 = vmatprep.subr.mxu0 0.0
    %1180 = vmatpush1.msra.mxu0 0.0
    %1181 = vmatprep.subr.mxu0 0.0
    %1182 = vmatpush1.msra.mxu0 0.0
    %1183 = vmatprep.subr.mxu0 0.0
    %1184 = vmatpush1.msra.mxu0 0.0
    %1185 = vmatprep.subr.mxu0 0.0
    %1186 = vmatpush1.msra.mxu0 0.0
    %1187 = vmatprep.subr.mxu0 0.0
    %1188 = vmatpush1.msra.mxu0 0.0
    %1189 = vmatprep.subr.mxu0 0.0
    %1190 = vmatpush1.msra.mxu0 0.0
    %1191 = vmatprep.subr.mxu0 0.0
    %1192 = vmatpush1.msra.mxu0 0.0
    %1193 = vmatprep.subr.mxu0 0.0
    %1194 = vmatpush1.msra.mxu0 0.0
    %1195 = vmatprep.mubr.f32.mxu0 0.0
    %1196 = vmatmul.mubr.f32.gmra.mrb[0].mxu0 %v1129
    %v1197 = vpop.f32.mrb[0].mxu0
    %v1198 = vadd.f32 0.0, %v1197
    %v1199 = vpop.f32.mrb[0].mxu0
    %1200 = vdwg.mxu0
    %v1201 = vadd.f32 %v854, %v1198
    %v1202 = vlaneseq
    %v1203 = vshrl.u32 %v1202, 7
    %v1204 = vsub.s32 3, %v1203
    %v1205 = vrot.slane %v163, %v1204
    %1207 = vrot.lane.b32.xlu0 %v1205, 32
    %v1208 = vpop.permute.xlu0 %1207
    %v1210 = vmul.f32 %v155, %v1208
    %v1211 = vmul.f32 %v160, %v1208
    %1212 = vrot.lane.b32.xlu0 %v1205, 64
    %v1213 = vpop.permute.xlu0 %1212
    %v1215 = vmul.f32 %v155, %v1213
    %v1216 = vmul.f32 %v160, %v1213
    %1218 = vrot.lane.b32.xlu0 %v1210, 96
    %v1219 = vpop.permute.xlu0 %1218
    %v1220 = vsel %vm81, %v1219, 0
    %1222 = vmatprep.subr.mxu0 0.0
    %1223 = vmatpush1.xpose.msra.mxu0 %v1220
    %1224 = vmatprep.subr.mxu0 0.0
    %1225 = vmatpush1.xpose.msra.mxu0 0.0
    %1226 = vmatprep.subr.mxu0 0.0
    %1227 = vmatpush1.xpose.msra.mxu0 0.0
    %1228 = vmatprep.subr.mxu0 0.0
    %1229 = vmatpush1.xpose.msra.mxu0 0.0
    %1230 = vmatprep.subr.mxu0 0.0
    %1231 = vmatpush1.xpose.msra.mxu0 0.0
    %1232 = vmatprep.subr.mxu0 0.0
    %1233 = vmatpush1.xpose.msra.mxu0 0.0
    %1234 = vmatprep.subr.mxu0 0.0
    %1235 = vmatpush1.xpose.msra.mxu0 0.0
    %1236 = vmatprep.subr.mxu0 0.0
    %1237 = vmatpush1.xpose.msra.mxu0 0.0
    %1238 = vmatprep.subr.mxu0 0.0
    %1239 = vmatpush1.xpose.msra.mxu0 0.0
    %1240 = vmatprep.subr.mxu0 0.0
    %1241 = vmatpush1.xpose.msra.mxu0 0.0
    %1242 = vmatprep.subr.mxu0 0.0
    %1243 = vmatpush1.xpose.msra.mxu0 0.0
    %1244 = vmatprep.subr.mxu0 0.0
    %1245 = vmatpush1.xpose.msra.mxu0 0.0
    %1246 = vmatprep.subr.mxu0 0.0
    %1247 = vmatpush1.xpose.msra.mxu0 0.0
    %1248 = vmatprep.subr.mxu0 0.0
    %1249 = vmatpush1.xpose.msra.mxu0 0.0
    %1250 = vmatprep.subr.mxu0 0.0
    %1251 = vmatpush1.xpose.msra.mxu0 0.0
    %1252 = vmatprep.subr.mxu0 0.0
    %1253 = vmatpush1.xpose.msra.mxu0 0.0
    %1254 = vmatprep.subr.mxu0 0.0
    %1255 = vmatpush1.xpose.msra.mxu0 0.0
    %1256 = vmatprep.subr.mxu0 0.0
    %1257 = vmatpush1.xpose.msra.mxu0 0.0
    %1258 = vmatprep.subr.mxu0 0.0
    %1259 = vmatpush1.xpose.msra.mxu0 0.0
    %1260 = vmatprep.subr.mxu0 0.0
    %1261 = vmatpush1.xpose.msra.mxu0 0.0
    %1262 = vmatprep.subr.mxu0 0.0
    %1263 = vmatpush1.xpose.msra.mxu0 0.0
    %1264 = vmatprep.subr.mxu0 0.0
    %1265 = vmatpush1.xpose.msra.mxu0 0.0
    %1266 = vmatprep.subr.mxu0 0.0
    %1267 = vmatpush1.xpose.msra.mxu0 0.0
    %1268 = vmatprep.subr.mxu0 0.0
    %1269 = vmatpush1.xpose.msra.mxu0 0.0
    %1270 = vmatprep.subr.mxu0 0.0
    %1271 = vmatpush1.xpose.msra.mxu0 0.0
    %1272 = vmatprep.subr.mxu0 0.0
    %1273 = vmatpush1.xpose.msra.mxu0 0.0
    %1274 = vmatprep.subr.mxu0 0.0
    %1275 = vmatpush1.xpose.msra.mxu0 0.0
    %1276 = vmatprep.subr.mxu0 0.0
    %1277 = vmatpush1.xpose.msra.mxu0 0.0
    %1278 = vmatprep.subr.mxu0 0.0
    %1279 = vmatpush1.xpose.msra.mxu0 0.0
    %1280 = vmatprep.subr.mxu0 0.0
    %1281 = vmatpush1.xpose.msra.mxu0 0.0
    %1282 = vmatprep.subr.mxu0 0.0
    %1283 = vmatpush1.xpose.msra.mxu0 0.0
    %1284 = vmatprep.subr.mxu0 0.0
    %1285 = vmatpush1.xpose.msra.mxu0 0.0
    %1286 = vmatprep.mubr.f32.mxu0 0.0
    %1287 = vmatmul.mubr.f32.gmra.mrb[0].mxu0 %v183
    %v1288 = vpop.f32.mrb[0].mxu0
    %v1289 = vadd.f32 0.0, %v1288
    %v1290 = vpop.f32.mrb[0].mxu0
    %1291 = vdwg.mxu0
    %v1292 = vsel %vm257, %v1289, -inf
    %1293 = vmax.xlane.f32.xlu0 %v1292
    %v1294 = vpop.xlane.xlu0 %1293
    %v1295 = vsub.f32 %v1289, %v1294
    %v1296 = vmul.f32 %v1295, 1.442695
    %v1297 = vpow.pop %v1296
    %v1298 = vsel %vm257, %v1297, 0.0
    %1299 = vadd.xlane.f32.xlu0 %v1298
    %v1300 = vpop.xlane.xlu0 %1299
    %v1301 = vrcp.pop %v1300
    %v1302 = vmul.f32 1.0, %v1301
    %v1303 = vmul.f32 %v1297, %v1302
    %1305 = vrot.lane.b32.xlu0 %v1215, 64
    %v1306 = vpop.permute.xlu0 %1305
    %v1309 = vsel %vm257, %v1303, 0
    %1311 = vmatprep.subr.mxu0 0.0
    %1312 = vmatpush1.msra.mxu0 %v1306
    %1313 = vmatprep.subr.mxu0 0.0
    %1314 = vmatpush1.msra.mxu0 0.0
    %1315 = vmatprep.subr.mxu0 0.0
    %1316 = vmatpush1.msra.mxu0 0.0
    %1317 = vmatprep.subr.mxu0 0.0
    %1318 = vmatpush1.msra.mxu0 0.0
    %1319 = vmatprep.subr.mxu0 0.0
    %1320 = vmatpush1.msra.mxu0 0.0
    %1321 = vmatprep.subr.mxu0 0.0
    %1322 = vmatpush1.msra.mxu0 0.0
    %1323 = vmatprep.subr.mxu0 0.0
    %1324 = vmatpush1.msra.mxu0 0.0
    %1325 = vmatprep.subr.mxu0 0.0
    %1326 = vmatpush1.msra.mxu0 0.0
    %1327 = vmatprep.subr.mxu0 0.0
    %1328 = vmatpush1.msra.mxu0 0.0
    %1329 = vmatprep.subr.mxu0 0.0
    %1330 = vmatpush1.msra.mxu0 0.0
    %1331 = vmatprep.subr.mxu0 0.0
    %1332 = vmatpush1.msra.mxu0 0.0
    %1333 = vmatprep.subr.mxu0 0.0
    %1334 = vmatpush1.msra.mxu0 0.0
    %1335 = vmatprep.subr.mxu0 0.0
    %1336 = vmatpush1.msra.mxu0 0.0
    %1337 = vmatprep.subr.mxu0 0.0
    %1338 = vmatpush1.msra.mxu0 0.0
    %1339 = vmatprep.subr.mxu0 0.0
    %1340 = vmatpush1.msra.mxu0 0.0
    %1341 = vmatprep.subr.mxu0 0.0
    %1342 = vmatpush1.msra.mxu0 0.0
    %1343 = vmatprep.subr.mxu0 0.0
    %1344 = vmatpush1.msra.mxu0 0.0
    %1345 = vmatprep.subr.mxu0 0.0
    %1346 = vmatpush1.msra.mxu0 0.0
    %1347 = vmatprep.subr.mxu0 0.0
    %1348 = vmatpush1.msra.mxu0 0.0
    %1349 = vmatprep.subr.mxu0 0.0
    %1350 = vmatpush1.msra.mxu0 0.0
    %1351 = vmatprep.subr.mxu0 0.0
    %1352 = vmatpush1.msra.mxu0 0.0
    %1353 = vmatprep.subr.mxu0 0.0
    %1354 = vmatpush1.msra.mxu0 0.0
    %1355 = vmatprep.subr.mxu0 0.0
    %1356 = vmatpush1.msra.mxu0 0.0
    %1357 = vmatprep.subr.mxu0 0.0
    %1358 = vmatpush1.msra.mxu0 0.0
    %1359 = vmatprep.subr.mxu0 0.0
    %1360 = vmatpush1.msra.mxu0 0.0
    %1361 = vmatprep.subr.mxu0 0.0
    %1362 = vmatpush1.msra.mxu0 0.0
    %1363 = vmatprep.subr.mxu0 0.0
    %1364 = vmatpush1.msra.mxu0 0.0
    %1365 = vmatprep.subr.mxu0 0.0
    %1366 = vmatpush1.msra.mxu0 0.0
    %1367 = vmatprep.subr.mxu0 0.0
    %1368 = vmatpush1.msra.mxu0 0.0
    %1369 = vmatprep.subr.mxu0 0.0
    %1370 = vmatpush1.msra.mxu0 0.0
    %1371 = vmatprep.subr.mxu0 0.0
    %1372 = vmatpush1.msra.mxu0 0.0
    %1373 = vmatprep.subr.mxu0 0.0
    %1374 = vmatpush1.msra.mxu0 0.0
    %1375 = vmatprep.mubr.f32.mxu0 0.0
    %1376 = vmatmul.mubr.f32.gmra.mrb[0].mxu0 %v1309
    %v1377 = vpop.f32.mrb[0].mxu0
    %v1378 = vadd.f32 0.0, %v1377
    %v1379 = vpop.f32.mrb[0].mxu0
    %1380 = vdwg.mxu0
    %v1381 = vadd.f32 %v1036, %v1378
    %1383 = vrot.lane.b32.xlu0 %v1211, 96
    %v1384 = vpop.permute.xlu0 %1383
    %v1385 = vsel %vm81, %v1384, 0
    %1387 = vmatprep.subr.mxu0 0.0
    %1388 = vmatpush1.xpose.msra.mxu0 %v1385
    %1389 = vmatprep.subr.mxu0 0.0
    %1390 = vmatpush1.xpose.msra.mxu0 0.0
    %1391 = vmatprep.subr.mxu0 0.0
    %1392 = vmatpush1.xpose.msra.mxu0 0.0
    %1393 = vmatprep.subr.mxu0 0.0
    %1394 = vmatpush1.xpose.msra.mxu0 0.0
    %1395 = vmatprep.subr.mxu0 0.0
    %1396 = vmatpush1.xpose.msra.mxu0 0.0
    %1397 = vmatprep.subr.mxu0 0.0
    %1398 = vmatpush1.xpose.msra.mxu0 0.0
    %1399 = vmatprep.subr.mxu0 0.0
    %1400 = vmatpush1.xpose.msra.mxu0 0.0
    %1401 = vmatprep.subr.mxu0 0.0
    %1402 = vmatpush1.xpose.msra.mxu0 0.0
    %1403 = vmatprep.subr.mxu0 0.0
    %1404 = vmatpush1.xpose.msra.mxu0 0.0
    %1405 = vmatprep.subr.mxu0 0.0
    %1406 = vmatpush1.xpose.msra.mxu0 0.0
    %1407 = vmatprep.subr.mxu0 0.0
    %1408 = vmatpush1.xpose.msra.mxu0 0.0
    %1409 = vmatprep.subr.mxu0 0.0
    %1410 = vmatpush1.xpose.msra.mxu0 0.0
    %1411 = vmatprep.subr.mxu0 0.0
    %1412 = vmatpush1.xpose.msra.mxu0 0.0
    %1413 = vmatprep.subr.mxu0 0.0
    %1414 = vmatpush1.xpose.msra.mxu0 0.0
    %1415 = vmatprep.subr.mxu0 0.0
    %1416 = vmatpush1.xpose.msra.mxu0 0.0
    %1417 = vmatprep.subr.mxu0 0.0
    %1418 = vmatpush1.xpose.msra.mxu0 0.0
    %1419 = vmatprep.subr.mxu0 0.0
    %1420 = vmatpush1.xpose.msra.mxu0 0.0
    %1421 = vmatprep.subr.mxu0 0.0
    %1422 = vmatpush1.xpose.msra.mxu0 0.0
    %1423 = vmatprep.subr.mxu0 0.0
    %1424 = vmatpush1.xpose.msra.mxu0 0.0
    %1425 = vmatprep.subr.mxu0 0.0
    %1426 = vmatpush1.xpose.msra.mxu0 0.0
    %1427 = vmatprep.subr.mxu0 0.0
    %1428 = vmatpush1.xpose.msra.mxu0 0.0
    %1429 = vmatprep.subr.mxu0 0.0
    %1430 = vmatpush1.xpose.msra.mxu0 0.0
    %1431 = vmatprep.subr.mxu0 0.0
    %1432 = vmatpush1.xpose.msra.mxu0 0.0
    %1433 = vmatprep.subr.mxu0 0.0
    %1434 = vmatpush1.xpose.msra.mxu0 0.0
    %1435 = vmatprep.subr.mxu0 0.0
    %1436 = vmatpush1.xpose.msra.mxu0 0.0
    %1437 = vmatprep.subr.mxu0 0.0
    %1438 = vmatpush1.xpose.msra.mxu0 0.0
    %1439 = vmatprep.subr.mxu0 0.0
    %1440 = vmatpush1.xpose.msra.mxu0 0.0
    %1441 = vmatprep.subr.mxu0 0.0
    %1442 = vmatpush1.xpose.msra.mxu0 0.0
    %1443 = vmatprep.subr.mxu0 0.0
    %1444 = vmatpush1.xpose.msra.mxu0 0.0
    %1445 = vmatprep.subr.mxu0 0.0
    %1446 = vmatpush1.xpose.msra.mxu0 0.0
    %1447 = vmatprep.subr.mxu0 0.0
    %1448 = vmatpush1.xpose.msra.mxu0 0.0
    %1449 = vmatprep.subr.mxu0 0.0
    %1450 = vmatpush1.xpose.msra.mxu0 0.0
    %1451 = vmatprep.mubr.f32.mxu0 0.0
    %1452 = vmatmul.mubr.f32.gmra.mrb[0].mxu0 %v274
    %v1453 = vpop.f32.mrb[0].mxu0
    %v1454 = vadd.f32 0.0, %v1453
    %v1455 = vpop.f32.mrb[0].mxu0
    %1456 = vdwg.mxu0
    %v1457 = vsel %vm257, %v1454, -inf
    %1458 = vmax.xlane.f32.xlu0 %v1457
    %v1459 = vpop.xlane.xlu0 %1458
    %v1460 = vsub.f32 %v1454, %v1459
    %v1461 = vmul.f32 %v1460, 1.442695
    %v1462 = vpow.pop %v1461
    %v1463 = vsel %vm257, %v1462, 0.0
    %1464 = vadd.xlane.f32.xlu0 %v1463
    %v1465 = vpop.xlane.xlu0 %1464
    %v1466 = vrcp.pop %v1465
    %v1467 = vmul.f32 1.0, %v1466
    %v1468 = vmul.f32 %v1462, %v1467
    %1470 = vrot.lane.b32.xlu0 %v1216, 64
    %v1471 = vpop.permute.xlu0 %1470
    %v1474 = vsel %vm257, %v1468, 0
    %1476 = vmatprep.subr.mxu0 0.0
    %1477 = vmatpush1.msra.mxu0 %v1471
    %1478 = vmatprep.subr.mxu0 0.0
    %1479 = vmatpush1.msra.mxu0 0.0
    %1480 = vmatprep.subr.mxu0 0.0
    %1481 = vmatpush1.msra.mxu0 0.0
    %1482 = vmatprep.subr.mxu0 0.0
    %1483 = vmatpush1.msra.mxu0 0.0
    %1484 = vmatprep.subr.mxu0 0.0
    %1485 = vmatpush1.msra.mxu0 0.0
    %1486 = vmatprep.subr.mxu0 0.0
    %1487 = vmatpush1.msra.mxu0 0.0
    %1488 = vmatprep.subr.mxu0 0.0
    %1489 = vmatpush1.msra.mxu0 0.0
    %1490 = vmatprep.subr.mxu0 0.0
    %1491 = vmatpush1.msra.mxu0 0.0
    %1492 = vmatprep.subr.mxu0 0.0
    %1493 = vmatpush1.msra.mxu0 0.0
    %1494 = vmatprep.subr.mxu0 0.0
    %1495 = vmatpush1.msra.mxu0 0.0
    %1496 = vmatprep.subr.mxu0 0.0
    %1497 = vmatpush1.msra.mxu0 0.0
    %1498 = vmatprep.subr.mxu0 0.0
    %1499 = vmatpush1.msra.mxu0 0.0
    %1500 = vmatprep.subr.mxu0 0.0
    %1501 = vmatpush1.msra.mxu0 0.0
    %1502 = vmatprep.subr.mxu0 0.0
    %1503 = vmatpush1.msra.mxu0 0.0
    %1504 = vmatprep.subr.mxu0 0.0
    %1505 = vmatpush1.msra.mxu0 0.0
    %1506 = vmatprep.subr.mxu0 0.0
    %1507 = vmatpush1.msra.mxu0 0.0
    %1508 = vmatprep.subr.mxu0 0.0
    %1509 = vmatpush1.msra.mxu0 0.0
    %1510 = vmatprep.subr.mxu0 0.0
    %1511 = vmatpush1.msra.mxu0 0.0
    %1512 = vmatprep.subr.mxu0 0.0
    %1513 = vmatpush1.msra.mxu0 0.0
    %1514 = vmatprep.subr.mxu0 0.0
    %1515 = vmatpush1.msra.mxu0 0.0
    %1516 = vmatprep.subr.mxu0 0.0
    %1517 = vmatpush1.msra.mxu0 0.0
    %1518 = vmatprep.subr.mxu0 0.0
    %1519 = vmatpush1.msra.mxu0 0.0
    %1520 = vmatprep.subr.mxu0 0.0
    %1521 = vmatpush1.msra.mxu0 0.0
    %1522 = vmatprep.subr.mxu0 0.0
    %1523 = vmatpush1.msra.mxu0 0.0
    %1524 = vmatprep.subr.mxu0 0.0
    %1525 = vmatpush1.msra.mxu0 0.0
    %1526 = vmatprep.subr.mxu0 0.0
    %1527 = vmatpush1.msra.mxu0 0.0
    %1528 = vmatprep.subr.mxu0 0.0
    %1529 = vmatpush1.msra.mxu0 0.0
    %1530 = vmatprep.subr.mxu0 0.0
    %1531 = vmatpush1.msra.mxu0 0.0
    %1532 = vmatprep.subr.mxu0 0.0
    %1533 = vmatpush1.msra.mxu0 0.0
    %1534 = vmatprep.subr.mxu0 0.0
    %1535 = vmatpush1.msra.mxu0 0.0
    %1536 = vmatprep.subr.mxu0 0.0
    %1537 = vmatpush1.msra.mxu0 0.0
    %1538 = vmatprep.subr.mxu0 0.0
    %1539 = vmatpush1.msra.mxu0 0.0
    %1540 = vmatprep.mubr.f32.mxu0 0.0
    %1541 = vmatmul.mubr.f32.gmra.mrb[0].mxu0 %v1474
    %v1542 = vpop.f32.mrb[0].mxu0
    %v1543 = vadd.f32 0.0, %v1542
    %v1544 = vpop.f32.mrb[0].mxu0
    %1545 = vdwg.mxu0
    %v1546 = vadd.f32 %v1201, %v1543
    %1547 = vrot.lane.b32.xlu0 %v461, 8
    %v1548 = vpop.permute.xlu0 %1547
    %1550 = vrot.lane.b32.xlu0 %v958, 16
    %v1551 = vpop.permute.xlu0 %1550
    %1553 = vrot.lane.b32.xlu0 %v1303, 24
    %v1554 = vpop.permute.xlu0 %1553
    %v1556 = vsel %vm257, %v269, %v1548
    %vm1557 = vcmask 130048
    %v1558 = vsel %vm1557, %v1556, %v1551
    %vm1559 = vcmask 195584
    %v1560 = vsel %vm1559, %v1558, %v1554
    %1561 = vrot.lane.b32.xlu0 %v702, 8
    %v1562 = vpop.permute.xlu0 %1561
    %1564 = vrot.lane.b32.xlu0 %v1123, 16
    %v1565 = vpop.permute.xlu0 %1564
    %1567 = vrot.lane.b32.xlu0 %v1468, 24
    %v1568 = vpop.permute.xlu0 %1567
    %v1570 = vsel %vm257, %v359, %v1562
    %v1571 = vsel %vm1557, %v1570, %v1565
    %v1572 = vsel %vm1559, %v1571, %v1568
    %1573 = vst.msk [vmem:[#allocation9] sm:$0xff] %vm81, %v1560
    %1574 = vst.msk [vmem:[#allocation9 + $0x8] sm:$0xff] %vm81, %v1572
    %v1575 = vld [vmem:[#allocation7] sm:$0xff]
    %v1576 = vld [vmem:[#allocation7 + $0x8] sm:$0xff]
    %v1577 = vld [vmem:[#allocation7 + $0x10] sm:$0xff]
    %v1578 = vld [vmem:[#allocation7 + $0x18] sm:$0xff]
    %v1579 = vld [vmem:[%s5] sm:$0x1]
    %v1581 = vlaneseq
    %v1582 = vshrl.u32 %v1581, 7
    %v1583 = vsub.s32 0, %v1582
    %v1584 = vrot.slane %v1579, %v1583
    %v1587 = vsel %vm81, %v1381, 0
    %v1590 = vsel %vm81, %v1546, 0
    %1592 = vmatprep.subr.mxu0 0.0
    %1593 = vmatpush1.msra.mxu0 %v1575
    %1594 = vmatprep.subr.mxu0 0.0
    %1595 = vmatpush1.msra.mxu0 %v1576
    %1596 = vmatprep.subr.mxu0 0.0
    %1597 = vmatpush1.msra.mxu0 %v1577
    %1598 = vmatprep.subr.mxu0 0.0
    %1599 = vmatpush1.msra.mxu0 %v1578
    %1600 = vmatprep.subr.mxu0 0.0
    %1601 = vmatpush1.msra.mxu0 0.0
    %1602 = vmatprep.subr.mxu0 0.0
    %1603 = vmatpush1.msra.mxu0 0.0
    %1604 = vmatprep.subr.mxu0 0.0
    %1605 = vmatpush1.msra.mxu0 0.0
    %1606 = vmatprep.subr.mxu0 0.0
    %1607 = vmatpush1.msra.mxu0 0.0
    %1608 = vmatprep.subr.mxu0 0.0
    %1609 = vmatpush1.msra.mxu0 0.0
    %1610 = vmatprep.subr.mxu0 0.0
    %1611 = vmatpush1.msra.mxu0 0.0
    %1612 = vmatprep.subr.mxu0 0.0
    %1613 = vmatpush1.msra.mxu0 0.0
    %1614 = vmatprep.subr.mxu0 0.0
    %1615 = vmatpush1.msra.mxu0 0.0
    %1616 = vmatprep.subr.mxu0 0.0
    %1617 = vmatpush1.msra.mxu0 0.0
    %1618 = vmatprep.subr.mxu0 0.0
    %1619 = vmatpush1.msra.mxu0 0.0
    %1620 = vmatprep.subr.mxu0 0.0
    %1621 = vmatpush1.msra.mxu0 0.0
    %1622 = vmatprep.subr.mxu0 0.0
    %1623 = vmatpush1.msra.mxu0 0.0
    %1624 = vmatprep.subr.mxu0 0.0
    %1625 = vmatpush1.msra.mxu0 0.0
    %1626 = vmatprep.subr.mxu0 0.0
    %1627 = vmatpush1.msra.mxu0 0.0
    %1628 = vmatprep.subr.mxu0 0.0
    %1629 = vmatpush1.msra.mxu0 0.0
    %1630 = vmatprep.subr.mxu0 0.0
    %1631 = vmatpush1.msra.mxu0 0.0
    %1632 = vmatprep.subr.mxu0 0.0
    %1633 = vmatpush1.msra.mxu0 0.0
    %1634 = vmatprep.subr.mxu0 0.0
    %1635 = vmatpush1.msra.mxu0 0.0
    %1636 = vmatprep.subr.mxu0 0.0
    %1637 = vmatpush1.msra.mxu0 0.0
    %1638 = vmatprep.subr.mxu0 0.0
    %1639 = vmatpush1.msra.mxu0 0.0
    %1640 = vmatprep.subr.mxu0 0.0
    %1641 = vmatpush1.msra.mxu0 0.0
    %1642 = vmatprep.subr.mxu0 0.0
    %1643 = vmatpush1.msra.mxu0 0.0
    %1644 = vmatprep.subr.mxu0 0.0
    %1645 = vmatpush1.msra.mxu0 0.0
    %1646 = vmatprep.subr.mxu0 0.0
    %1647 = vmatpush1.msra.mxu0 0.0
    %1648 = vmatprep.subr.mxu0 0.0
    %1649 = vmatpush1.msra.mxu0 0.0
    %1650 = vmatprep.subr.mxu0 0.0
    %1651 = vmatpush1.msra.mxu0 0.0
    %1652 = vmatprep.subr.mxu0 0.0
    %1653 = vmatpush1.msra.mxu0 0.0
    %1654 = vmatprep.subr.mxu0 0.0
    %1655 = vmatpush1.msra.mxu0 0.0
    %1656 = vmatprep.mubr.f32.mxu0 0.0
    %1657 = vmatmul.mubr.f32.gmra.mrb[0].mxu0 %v1587
    %v1658 = vpop.f32.mrb[0].mxu0
    %v1659 = vadd.f32 %v1584, %v1658
    %v1660 = vpop.f32.mrb[0].mxu0
    %1661 = vmatprep.mubr.f32.mxu0 0.0
    %1662 = vmatmul.mubr.f32.gmra.mrb[0].mxu0 %v1590
    %v1663 = vpop.f32.mrb[0].mxu0
    %v1664 = vadd.f32 %v1584, %v1663
    %v1665 = vpop.f32.mrb[0].mxu0
    %1666 = vdwg.mxu0
    %1667 = vst.msk [vmem:[#allocation8] sm:$0xff] %vm81, %v1659
    %1668 = vst.msk [vmem:[#allocation8 + $0x8] sm:$0xff] %vm81, %v1664
    // Predicated region
    $region38: #{tpu_custom_call.1} parent=1 // pred_check
      _
    $region39: #{tpu_custom_call.1} parent=1 // pred_check_branch
      %1670 = sbr.rel (0) target = $region41
    $region40: #{tpu_custom_call.1} parent=1 // pred_region
      %s1672 = ssub.s32 256, 256
      %1673 = vsyncadd [#allocation4], %s1672
      %s1674 = sshll.u32 [#allocation8], 4
      %s1675 = int_to_ptr.vmem [resolvable:$true] %s1674
      %1680 = dma.vmem_to_hbm [thread:$0]  %s1675, 256, %s6, [#allocation4], 128, 128, 8
    $region41: #{tpu_custom_call.1} parent=1 // pred_fallthru
      _
    // Predicated region
    $region42: #{tpu_custom_call.1} parent=1 // pred_check
      _
    $region43: #{tpu_custom_call.1} parent=1 // pred_check_branch
      %1682 = sbr.rel (0) target = $region45
    $region44: #{tpu_custom_call.1} parent=1 // pred_region
      %s1684 = ssub.s32 256, 256
      %1685 = vsyncadd [#allocation10], %s1684
      %s1686 = sshll.u32 [#allocation9], 4
      %s1687 = int_to_ptr.vmem [resolvable:$true] %s1686
      %1692 = dma.vmem_to_hbm [thread:$0]  %s1687, 256, %s7, [#allocation10], 128, 128, 8
    $region45: #{tpu_custom_call.1} parent=1 // pred_fallthru
      _
    // Predicated region
    $region46: #{tpu_custom_call.1} parent=1 // pred_check
      _
    $region47: #{tpu_custom_call.1} parent=1 // pred_check_branch
      %1694 = sbr.rel (0) target = $region49
    $region48: #{tpu_custom_call.1} parent=1 // pred_region
      %1695 = dma.done [#allocation4], 256
    $region49: #{tpu_custom_call.1} parent=1 // pred_fallthru
      _
    // Predicated region
    $region50: #{tpu_custom_call.1} parent=1 // pred_check
      _
    $region51: #{tpu_custom_call.1} parent=1 // pred_check_branch
      %1697 = sbr.rel (0) target = $region53
    $region52: #{tpu_custom_call.1} parent=1 // pred_region
      %1698 = dma.done [#allocation10], 256
    $region53: #{tpu_custom_call.1} parent=1 // pred_fallthru
      _
    %1699 = vsyncpa [#allocation3], 1
    %1700 = vsyncpa [#allocation6], 1
    %1701 = vsyncpa [#allocation4], 1
    %1702 = vsyncpa [#allocation10], 1

</llo_original>
